<compile_context>
chip_gen: v6e
topology: v6e:2x2x1
jax: 0.10.0
libtpu: 0.0.40
codegen_flags: <defaults>
</compile_context>

<pallas_src>
import jax
import jax.numpy as jnp
import numpy as np
from jax.experimental import pallas as pl
from jax.experimental.pallas import tpu as pltpu

_INV_SQRT2 = 0.7071067811865476


def _erf(z):
    # Abramowitz & Stegun 7.1.26 rational approximation, |err| < 1.5e-7 (f32-exact for our use).
    # Uses only abs/exp/mul/add/div/where, all of which lower cleanly in Mosaic.
    a = jnp.abs(z)
    t = 1.0 / (1.0 + 0.3275911 * a)
    poly = t * (0.254829592 + t * (-0.284496736 + t * (1.421413741
               + t * (-1.453152027 + t * 1.061405429))))
    e = 1.0 - poly * jnp.exp(-a * a)
    return jnp.where(z < 0.0, -e, e)


def _gelu(v):  # exact (erf-based) GELU, matching torch.nn.GELU() default
    return 0.5 * v * (1.0 + _erf(v * _INV_SQRT2))


def _silu(v):  # SiLU via exp only (EUP)
    return v * (1.0 / (1.0 + jnp.exp(-v)))


# ----------------------------- Pallas kernel -----------------------------
def _sffn_kernel(x_ref, emb_ref, w1_ref, b1_ref, w2_ref, b2_ref,
                 we_ref, be_ref, g_ref, bln_ref, wo_ref, bo_ref, o_ref):
    x = x_ref[0]                                           # (TT, D) f32
    D = x.shape[-1]

    # ---- per-head FFN fused as block-diagonal matmuls (bf16 operands, f32 accumulate) ----
    h = jnp.dot(x.astype(jnp.bfloat16), w1_ref[...],
                preferred_element_type=jnp.float32) + b1_ref[...]        # (TT, H*F)
    h = _gelu(h)                                           # dropout = identity (eval mode)
    y = jnp.dot(h.astype(jnp.bfloat16), w2_ref[...],
                preferred_element_type=jnp.float32) + b2_ref[...]        # (TT, D)

    # ---- StylizationBlock: emb -> (scale, shift) (tiny matmul, kept f32) ----
    eo = jnp.dot(_silu(emb_ref[0]), we_ref[...],
                 preferred_element_type=jnp.float32) + be_ref[...]       # (1, 2D)
    scale = eo[:, :D]
    shift = eo[:, D:]

    # LayerNorm over the feature dim (eps = 1e-5, nn.LayerNorm default), all f32.
    mu = jnp.mean(y, axis=-1, keepdims=True)
    var = jnp.mean(jnp.square(y - mu), axis=-1, keepdims=True)
    yn = (y - mu) * jax.lax.rsqrt(var + 1e-5)
    yn = yn * g_ref[...] + bln_ref[...]
    yn = yn * (1.0 + scale) + shift

    # out_layers: SiLU -> (dropout identity) -> Linear
    yo = jnp.dot(_silu(yn).astype(jnp.bfloat16), wo_ref[...],
                 preferred_element_type=jnp.float32) + bo_ref[...]       # (TT, D)

    o_ref[0] = (x + yo).astype(o_ref.dtype)


# ----------------------------- tile selection -----------------------------
def _choose_t_tile(T, D, HF, E):
    """Largest T-tile (power-of-two multiple of 8, <= 512) whose per-step working set fits a
    conservative VMEM budget; small problems collapse to a single step."""
    weight_bytes = (D * HF + HF * D + D * D) * 2 + (E * 2 * D + HF + 6 * D) * 4
    budget = (24 << 20) - weight_bytes            # stay well under default scoped VMEM limits
    tt = 512
    while tt > 8:
        # double-buffered x/out slabs (f32) + f32 hidden activation + a few (TT, D) f32 temps
        working = 4 * tt * D * 4 + tt * HF * 4 + 3 * tt * D * 4
        if working <= budget:
            break
        tt //= 2
    t_pad8 = ((T + 7) // 8) * 8
    return min(tt, t_pad8)


# ----------------------------- wrapper -----------------------------
@jax.jit
def sffn_forward(x, emb, params):
    """x: (B, T, D) f32, emb: (B, E) f32  ->  (B, T, D) f32."""
    B, T, D = x.shape
    E = emb.shape[-1]
    HF = params["w1bd"].shape[1]

    TT = _choose_t_tile(T, D, HF, E)
    Tp = ((T + TT - 1) // TT) * TT
    xp = x if Tp == T else jnp.pad(x, ((0, 0), (0, Tp - T), (0, 0)))
    emb3 = emb.reshape(B, 1, E)

    grid = (B, Tp // TT)
    flops = 2 * B * Tp * (D * HF + HF * D + D * D) + 2 * B * grid[1] * E * 2 * D
    transcendentals = B * Tp * (HF + 2 * D)
    bytes_accessed = (4 * (xp.size + B * Tp * D + emb3.size)
                      + 2 * (params["w1bd"].size + params["w2bd"].size + params["wo"].size)
                      + 4 * (params["b1c"].size + params["b2c"].size + params["we"].size
                             + params["be"].size + params["ln_g"].size + params["ln_b"].size
                             + params["bo"].size))

    out = pl.pallas_call(
        _sffn_kernel,
        out_shape=jax.ShapeDtypeStruct((B, Tp, D), jnp.float32),
        grid_spec=pltpu.PrefetchScalarGridSpec(
            num_scalar_prefetch=0,
            grid=grid,
            in_specs=[
                pl.BlockSpec((1, TT, D), lambda b, t: (b, t, 0)),           # x slab
                pl.BlockSpec((1, 1, E), lambda b, t: (b, 0, 0)),            # emb (per batch)
                pl.BlockSpec(params["w1bd"].shape, lambda b, t: (0, 0)),    # block-diag W1 (bf16)
                pl.BlockSpec(params["b1c"].shape, lambda b, t: (0, 0)),
                pl.BlockSpec(params["w2bd"].shape, lambda b, t: (0, 0)),    # block-diag W2 (bf16)
                pl.BlockSpec(params["b2c"].shape, lambda b, t: (0, 0)),
                pl.BlockSpec(params["we"].shape, lambda b, t: (0, 0)),      # emb_layers Linear
                pl.BlockSpec(params["be"].shape, lambda b, t: (0, 0)),
                pl.BlockSpec(params["ln_g"].shape, lambda b, t: (0, 0)),    # LayerNorm gamma
                pl.BlockSpec(params["ln_b"].shape, lambda b, t: (0, 0)),    # LayerNorm beta
                pl.BlockSpec(params["wo"].shape, lambda b, t: (0, 0)),      # out_layers Linear (bf16)
                pl.BlockSpec(params["bo"].shape, lambda b, t: (0, 0)),
            ],
            out_specs=pl.BlockSpec((1, TT, D), lambda b, t: (b, t, 0)),
        ),
        compiler_params=pltpu.CompilerParams(
            dimension_semantics=("parallel", "parallel")),
        cost_estimate=pl.CostEstimate(flops=flops,
                                      transcendentals=transcendentals,
                                      bytes_accessed=bytes_accessed),
    )(xp, emb3, params["w1bd"], params["b1c"], params["w2bd"], params["b2c"],
      params["we"], params["be"], params["ln_g"], params["ln_b"],
      params["wo"], params["bo"])

    return out[:, :T] if Tp != T else out


# ----------------------------- parameter construction -----------------------------
def init_params(key, *, num_heads, latent_dim, ffn_dim, time_embed_dim):
    """nn.Linear-style init. Builds both the fused kernel params (block-diagonal bf16 weights,
    hoisted out of the forward path) and per-head f32 params for the pure-JAX reference."""
    H, L, F, E = num_heads, latent_dim, ffn_dim, time_embed_dim
    D = H * L
    HF = H * F

    def linear(kw, kb, out_dim, in_dim):
        bound = 1.0 / np.sqrt(in_dim)
        W = np.asarray(jax.random.uniform(kw, (out_dim, in_dim), minval=-bound,
                                          maxval=bound, dtype=jnp.float32))
        b = np.asarray(jax.random.uniform(kb, (out_dim,), minval=-bound,
                                          maxval=bound, dtype=jnp.float32))
        return W, b

    keys = jax.random.split(key, 4 * H + 4)
    w1 = np.zeros((H, L, F), np.float32); b1 = np.zeros((H, F), np.float32)
    w2 = np.zeros((H, F, L), np.float32); b2 = np.zeros((H, L), np.float32)
    for i in range(H):
        Wi, bi = linear(keys[4 * i + 0], keys[4 * i + 1], F, L)   # linear1_list[i]
        Wj, bj = linear(keys[4 * i + 2], keys[4 * i + 3], L, F)   # linear2_list[i]
        w1[i], b1[i] = Wi.T, bi
        w2[i], b2[i] = Wj.T, bj
    We, be = linear(keys[4 * H + 0], keys[4 * H + 1], 2 * D, E)   # emb_layers Linear
    # NOTE: torch zero-initializes proj_out's final Linear (zero_module); random init here so the
    # numerical test exercises the full path. The forward-pass math is identical.
    Wo, bo = linear(keys[4 * H + 2], keys[4 * H + 3], D, D)

    # Block-diagonal fusion of all per-head linears (heads use disjoint row/col blocks -> exact).
    w1bd = np.zeros((D, HF), np.float32)
    w2bd = np.zeros((HF, D), np.float32)
    for i in range(H):
        w1bd[i * L:(i + 1) * L, i * F:(i + 1) * F] = w1[i]
        w2bd[i * F:(i + 1) * F, i * L:(i + 1) * L] = w2[i]

    return {
        # fused kernel params (bf16 weights for MXU, f32 biases / norm / stylization)
        "w1bd": jnp.asarray(w1bd, jnp.bfloat16),
        "b1c": jnp.asarray(b1.reshape(1, HF)),
        "w2bd": jnp.asarray(w2bd, jnp.bfloat16),
        "b2c": jnp.asarray(b2.reshape(1, D)),
        "we": jnp.asarray(We.T),                  # (E, 2D) f32
        "be": jnp.asarray(be.reshape(1, 2 * D)),
        "ln_g": jnp.ones((1, D), jnp.float32),
        "ln_b": jnp.zeros((1, D), jnp.float32),
        "wo": jnp.asarray(Wo.T, jnp.bfloat16),    # (D, D)
        "bo": jnp.asarray(bo.reshape(1, D)),
        # per-head f32 params for the reference
        "w1": jnp.asarray(w1), "b1": jnp.asarray(b1),
        "w2": jnp.asarray(w2), "b2": jnp.asarray(b2),
        "wo_f32": jnp.asarray(Wo.T),
    }


# ----------------------------- pure-JAX reference of the torch forward -----------------------------
def reference_forward(x, emb, params):
    B, T, D = x.shape
    H = params["w1"].shape[0]
    L = D // H
    bf = jnp.bfloat16
    xh = x.reshape(B, T, H, L)
    outs = []
    for i in range(H):
        f = xh[:, :, i].reshape(B * T, L)
        h = jnp.dot(f.astype(bf), params["w1"][i].astype(bf),
                    preferred_element_type=jnp.float32) + params["b1"][i]
        h = jax.nn.gelu(h, approximate=False)              # torch nn.GELU() default (exact)
        o = jnp.dot(h.astype(bf), params["w2"][i].astype(bf),
                    preferred_element_type=jnp.float32) + params["b2"][i]
        outs.append(o.reshape(B, T, L))
    y = jnp.concatenate(outs, axis=-1)                     # (B, T, D)

    eo = jnp.dot(jax.nn.silu(emb), params["we"],
                 preferred_element_type=jnp.float32) + params["be"]      # (B, 2D)
    scale, shift = eo[:, None, :D], eo[:, None, D:]
    mu = jnp.mean(y, axis=-1, keepdims=True)
    var = jnp.mean((y - mu) ** 2, axis=-1, keepdims=True)
    yn = (y - mu) * jax.lax.rsqrt(var + 1e-5) * params["ln_g"][0] + params["ln_b"][0]
    yn = yn * (1.0 + scale) + shift
    yo = jnp.dot(jax.nn.silu(yn).reshape(B * T, D).astype(bf), params["wo_f32"].astype(bf),
                 preferred_element_type=jnp.float32).reshape(B, T, D) + params["bo"][0]
    return x + yo


# ----------------------------- main -----------------------------
if __name__ == "__main__":
    # TODO(synk): training-mode Dropout (RNG masking) is not implemented; eval-mode (identity) only.
    B, T = 2, 8
    NUM_HEADS = 4
    LATENT_DIM = 32            # per-head width (nn.Linear(latent_dim, ffn_dim) in the module)
    FFN_DIM = 64
    TIME_EMBED_DIM = 32
    D = NUM_HEADS * LATENT_DIM  # 128

    key = jax.random.PRNGKey(0)
    k_param, k_x, k_emb = jax.random.split(key, 3)
    params = init_params(k_param, num_heads=NUM_HEADS, latent_dim=LATENT_DIM,
                         ffn_dim=FFN_DIM, time_embed_dim=TIME_EMBED_DIM)

    x = jax.random.normal(k_x, (B, T, D), dtype=jnp.float32)
    emb = jax.random.normal(k_emb, (B, TIME_EMBED_DIM), dtype=jnp.float32)

    y = jax.block_until_ready(sffn_forward(x, emb, params))
    assert y.shape == (B, T, D)

    ref = jax.block_until_ready(reference_forward(x, emb, params))
    np.testing.assert_allclose(np.asarray(y), np.asarray(ref), rtol=2e-3, atol=2e-3)

    print("KERNEL_OK")
</pallas_src>

<mosaic_0001>
module attributes {stable_mosaic.version = 11 : i64} {
  func.func @_sffn_kernel(%arg0: i32, %arg1: i32, %arg2: memref<1x8x128xf32, #tpu.memory_space<vmem>>, %arg3: memref<1x1x32xf32, #tpu.memory_space<vmem>>, %arg4: memref<128x256xbf16, #tpu.memory_space<vmem>>, %arg5: memref<1x256xf32, #tpu.memory_space<vmem>>, %arg6: memref<256x128xbf16, #tpu.memory_space<vmem>>, %arg7: memref<1x128xf32, #tpu.memory_space<vmem>>, %arg8: memref<32x256xf32, #tpu.memory_space<vmem>>, %arg9: memref<1x256xf32, #tpu.memory_space<vmem>>, %arg10: memref<1x128xf32, #tpu.memory_space<vmem>>, %arg11: memref<1x128xf32, #tpu.memory_space<vmem>>, %arg12: memref<128x128xbf16, #tpu.memory_space<vmem>>, %arg13: memref<1x128xf32, #tpu.memory_space<vmem>>, %arg14: memref<1x8x128xf32, #tpu.memory_space<vmem>>) attributes {dimension_semantics = [#tpu.dimension_semantics<parallel>, #tpu.dimension_semantics<parallel>], iteration_bounds = array<i64: 2, 1>, scalar_prefetch = 0 : i64, scratch_operands = 0 : i64, tpu.core_type = #tpu.core_type<tc>, window_params = [{transform_indices = @transform_0, window_bounds = array<i64: 1, 8, 128>}, {transform_indices = @transform_1, window_bounds = array<i64: 1, 1, 32>}, {pipeline_mode = #tpu.pipeline_mode<synchronous>, transform_indices = @transform_2, window_bounds = array<i64: 128, 256>}, {pipeline_mode = #tpu.pipeline_mode<synchronous>, transform_indices = @transform_3, window_bounds = array<i64: 1, 256>}, {pipeline_mode = #tpu.pipeline_mode<synchronous>, transform_indices = @transform_4, window_bounds = array<i64: 256, 128>}, {pipeline_mode = #tpu.pipeline_mode<synchronous>, transform_indices = @transform_5, window_bounds = array<i64: 1, 128>}, {pipeline_mode = #tpu.pipeline_mode<synchronous>, transform_indices = @transform_6, window_bounds = array<i64: 32, 256>}, {pipeline_mode = #tpu.pipeline_mode<synchronous>, transform_indices = @transform_7, window_bounds = array<i64: 1, 256>}, {pipeline_mode = #tpu.pipeline_mode<synchronous>, transform_indices = @transform_8, window_bounds = array<i64: 1, 128>}, {pipeline_mode = #tpu.pipeline_mode<synchronous>, transform_indices = @transform_9, window_bounds = array<i64: 1, 128>}, {pipeline_mode = #tpu.pipeline_mode<synchronous>, transform_indices = @transform_10, window_bounds = array<i64: 128, 128>}, {pipeline_mode = #tpu.pipeline_mode<synchronous>, transform_indices = @transform_11, window_bounds = array<i64: 1, 128>}, {transform_indices = @transform_12, window_bounds = array<i64: 1, 8, 128>}]} {
    %c0 = arith.constant 0 : index
    %c0_0 = arith.constant 0 : index
    %c0_1 = arith.constant 0 : index
    %0 = vector.load %arg2[%c0, %c0_0, %c0_1] : memref<1x8x128xf32, #tpu.memory_space<vmem>>, vector<1x8x128xf32>
    %1 = vector.shape_cast %0 : vector<1x8x128xf32> to vector<8x128xf32>
    %2 = arith.truncf %1 : vector<8x128xf32> to vector<8x128xbf16>
    %c0_2 = arith.constant 0 : index
    %c0_3 = arith.constant 0 : index
    %3 = vector.load %arg4[%c0_2, %c0_3] : memref<128x256xbf16, #tpu.memory_space<vmem>>, vector<128x256xbf16>
    %cst = arith.constant dense<0.000000e+00> : vector<8x256xf32>
    %4 = tpu.matmul %2, %3, %cst {dimension_numbers = #tpu.dot_dimension_numbers<[1], [0], [0], [1], [0, 0, 1, 1], [], []>} : vector<8x128xbf16>, vector<128x256xbf16>, vector<8x256xf32> -> vector<8x256xf32>
    %c0_4 = arith.constant 0 : index
    %c0_5 = arith.constant 0 : index
    %5 = vector.load %arg5[%c0_4, %c0_5] : memref<1x256xf32, #tpu.memory_space<vmem>>, vector<1x256xf32>
    %6 = vector.broadcast %5 : vector<1x256xf32> to vector<8x256xf32>
    %7 = arith.addf %4, %6 : vector<8x256xf32>
    %cst_6 = arith.constant 5.000000e-01 : f32
    %8 = vector.broadcast %cst_6 : f32 to vector<8x256xf32>
    %9 = arith.mulf %8, %7 : vector<8x256xf32>
    %cst_7 = arith.constant 0.707106769 : f32
    %10 = vector.broadcast %cst_7 : f32 to vector<8x256xf32>
    %11 = arith.mulf %7, %10 : vector<8x256xf32>
    %12 = math.absf %11 : vector<8x256xf32>
    %cst_8 = arith.constant 0.327591091 : f32
    %13 = vector.broadcast %cst_8 : f32 to vector<8x256xf32>
    %14 = arith.mulf %13, %12 : vector<8x256xf32>
    %cst_9 = arith.constant 1.000000e+00 : f32
    %15 = vector.broadcast %cst_9 : f32 to vector<8x256xf32>
    %16 = arith.addf %15, %14 : vector<8x256xf32>
    %cst_10 = arith.constant 1.000000e+00 : f32
    %17 = vector.broadcast %cst_10 : f32 to vector<8x256xf32>
    %18 = arith.divf %17, %16 : vector<8x256xf32>
    %cst_11 = arith.constant 1.06140542 : f32
    %19 = vector.broadcast %cst_11 : f32 to vector<8x256xf32>
    %20 = arith.mulf %18, %19 : vector<8x256xf32>
    %cst_12 = arith.constant -1.45315206 : f32
    %21 = vector.broadcast %cst_12 : f32 to vector<8x256xf32>
    %22 = arith.addf %21, %20 : vector<8x256xf32>
    %23 = arith.mulf %18, %22 : vector<8x256xf32>
    %cst_13 = arith.constant 1.42141378 : f32
    %24 = vector.broadcast %cst_13 : f32 to vector<8x256xf32>
    %25 = arith.addf %24, %23 : vector<8x256xf32>
    %26 = arith.mulf %18, %25 : vector<8x256xf32>
    %cst_14 = arith.constant -0.284496725 : f32
    %27 = vector.broadcast %cst_14 : f32 to vector<8x256xf32>
    %28 = arith.addf %27, %26 : vector<8x256xf32>
    %29 = arith.mulf %18, %28 : vector<8x256xf32>
    %cst_15 = arith.constant 0.254829586 : f32
    %30 = vector.broadcast %cst_15 : f32 to vector<8x256xf32>
    %31 = arith.addf %30, %29 : vector<8x256xf32>
    %32 = arith.mulf %18, %31 : vector<8x256xf32>
    %cst_16 = arith.constant 0.000000e+00 : f32
    %33 = vector.broadcast %cst_16 : f32 to vector<8x256xf32>
    %34 = arith.subf %33, %12 : vector<8x256xf32>
    %35 = arith.mulf %34, %12 : vector<8x256xf32>
    %36 = math.exp %35 : vector<8x256xf32>
    %37 = arith.mulf %32, %36 : vector<8x256xf32>
    %cst_17 = arith.constant 1.000000e+00 : f32
    %38 = vector.broadcast %cst_17 : f32 to vector<8x256xf32>
    %39 = arith.subf %38, %37 : vector<8x256xf32>
    %cst_18 = arith.constant 0.000000e+00 : f32
    %40 = vector.broadcast %cst_18 : f32 to vector<8x256xf32>
    %41 = arith.cmpf olt, %11, %40 : vector<8x256xf32>
    %cst_19 = arith.constant 0.000000e+00 : f32
    %42 = vector.broadcast %cst_19 : f32 to vector<8x256xf32>
    %43 = arith.subf %42, %39 : vector<8x256xf32>
    %44 = arith.select %41, %43, %39 : vector<8x256xi1>, vector<8x256xf32>
    %cst_20 = arith.constant 1.000000e+00 : f32
    %45 = vector.broadcast %cst_20 : f32 to vector<8x256xf32>
    %46 = arith.addf %45, %44 : vector<8x256xf32>
    %47 = arith.mulf %9, %46 : vector<8x256xf32>
    %48 = arith.truncf %47 : vector<8x256xf32> to vector<8x256xbf16>
    %c0_21 = arith.constant 0 : index
    %c0_22 = arith.constant 0 : index
    %49 = vector.load %arg6[%c0_21, %c0_22] : memref<256x128xbf16, #tpu.memory_space<vmem>>, vector<256x128xbf16>
    %cst_23 = arith.constant dense<0.000000e+00> : vector<8x128xf32>
    %50 = tpu.matmul %48, %49, %cst_23 {dimension_numbers = #tpu.dot_dimension_numbers<[1], [0], [0], [1], [0, 0, 1, 1], [], []>} : vector<8x256xbf16>, vector<256x128xbf16>, vector<8x128xf32> -> vector<8x128xf32>
    %c0_24 = arith.constant 0 : index
    %c0_25 = arith.constant 0 : index
    %51 = vector.load %arg7[%c0_24, %c0_25] : memref<1x128xf32, #tpu.memory_space<vmem>>, vector<1x128xf32>
    %52 = vector.broadcast %51 : vector<1x128xf32> to vector<8x128xf32>
    %53 = arith.addf %50, %52 : vector<8x128xf32>
    %c0_26 = arith.constant 0 : index
    %c0_27 = arith.constant 0 : index
    %c0_28 = arith.constant 0 : index
    %54 = vector.load %arg3[%c0_26, %c0_27, %c0_28] : memref<1x1x32xf32, #tpu.memory_space<vmem>>, vector<1x1x32xf32>
    %55 = vector.shape_cast %54 : vector<1x1x32xf32> to vector<1x32xf32>
    %cst_29 = arith.constant 0.000000e+00 : f32
    %56 = vector.broadcast %cst_29 : f32 to vector<1x32xf32>
    %57 = arith.subf %56, %55 : vector<1x32xf32>
    %58 = math.exp %57 : vector<1x32xf32>
    %cst_30 = arith.constant 1.000000e+00 : f32
    %59 = vector.broadcast %cst_30 : f32 to vector<1x32xf32>
    %60 = arith.addf %59, %58 : vector<1x32xf32>
    %cst_31 = arith.constant 1.000000e+00 : f32
    %61 = vector.broadcast %cst_31 : f32 to vector<1x32xf32>
    %62 = arith.divf %61, %60 : vector<1x32xf32>
    %63 = arith.mulf %55, %62 : vector<1x32xf32>
    %c0_32 = arith.constant 0 : index
    %c0_33 = arith.constant 0 : index
    %64 = vector.load %arg8[%c0_32, %c0_33] : memref<32x256xf32, #tpu.memory_space<vmem>>, vector<32x256xf32>
    %cst_34 = arith.constant dense<0.000000e+00> : vector<1x256xf32>
    %65 = tpu.matmul %63, %64, %cst_34 {dimension_numbers = #tpu.dot_dimension_numbers<[1], [0], [0], [1], [0, 0, 1, 1], [], []>} : vector<1x32xf32>, vector<32x256xf32>, vector<1x256xf32> -> vector<1x256xf32>
    %c0_35 = arith.constant 0 : index
    %c0_36 = arith.constant 0 : index
    %66 = vector.load %arg9[%c0_35, %c0_36] : memref<1x256xf32, #tpu.memory_space<vmem>>, vector<1x256xf32>
    %67 = arith.addf %65, %66 : vector<1x256xf32>
    %68 = vector.extract_strided_slice %67 {offsets = [0, 0], sizes = [1, 128], strides = [1, 1]} : vector<1x256xf32> to vector<1x128xf32>
    %69 = vector.extract_strided_slice %67 {offsets = [0, 128], sizes = [1, 128], strides = [1, 1]} : vector<1x256xf32> to vector<1x128xf32>
    %cst_37 = arith.constant dense<0.000000e+00> : vector<8xf32>
    %70 = vector.multi_reduction <add>, %53, %cst_37 [1] : vector<8x128xf32> to vector<8xf32>
    %71 = vector.shape_cast %70 : vector<8xf32> to vector<8x1xf32>
    %cst_38 = arith.constant 1.280000e+02 : f32
    %72 = vector.broadcast %cst_38 : f32 to vector<8x1xf32>
    %73 = arith.divf %71, %72 : vector<8x1xf32>
    %74 = vector.broadcast %73 : vector<8x1xf32> to vector<8x128xf32>
    %75 = arith.subf %53, %74 : vector<8x128xf32>
    %76 = arith.mulf %75, %75 : vector<8x128xf32>
    %cst_39 = arith.constant dense<0.000000e+00> : vector<8xf32>
    %77 = vector.multi_reduction <add>, %76, %cst_39 [1] : vector<8x128xf32> to vector<8xf32>
    %78 = vector.shape_cast %77 : vector<8xf32> to vector<8x1xf32>
    %cst_40 = arith.constant 1.280000e+02 : f32
    %79 = vector.broadcast %cst_40 : f32 to vector<8x1xf32>
    %80 = arith.divf %78, %79 : vector<8x1xf32>
    %81 = vector.broadcast %73 : vector<8x1xf32> to vector<8x128xf32>
    %82 = arith.subf %53, %81 : vector<8x128xf32>
    %cst_41 = arith.constant 9.99999974E-6 : f32
    %83 = vector.broadcast %cst_41 : f32 to vector<8x1xf32>
    %84 = arith.addf %80, %83 : vector<8x1xf32>
    %85 = math.rsqrt %84 : vector<8x1xf32>
    %86 = vector.broadcast %85 : vector<8x1xf32> to vector<8x128xf32>
    %87 = arith.mulf %82, %86 : vector<8x128xf32>
    %c0_42 = arith.constant 0 : index
    %c0_43 = arith.constant 0 : index
    %88 = vector.load %arg10[%c0_42, %c0_43] : memref<1x128xf32, #tpu.memory_space<vmem>>, vector<1x128xf32>
    %89 = vector.broadcast %88 : vector<1x128xf32> to vector<8x128xf32>
    %90 = arith.mulf %87, %89 : vector<8x128xf32>
    %c0_44 = arith.constant 0 : index
    %c0_45 = arith.constant 0 : index
    %91 = vector.load %arg11[%c0_44, %c0_45] : memref<1x128xf32, #tpu.memory_space<vmem>>, vector<1x128xf32>
    %92 = vector.broadcast %91 : vector<1x128xf32> to vector<8x128xf32>
    %93 = arith.addf %90, %92 : vector<8x128xf32>
    %cst_46 = arith.constant 1.000000e+00 : f32
    %94 = vector.broadcast %cst_46 : f32 to vector<1x128xf32>
    %95 = arith.addf %94, %68 : vector<1x128xf32>
    %96 = vector.broadcast %95 : vector<1x128xf32> to vector<8x128xf32>
    %97 = arith.mulf %93, %96 : vector<8x128xf32>
    %98 = vector.broadcast %69 : vector<1x128xf32> to vector<8x128xf32>
    %99 = arith.addf %97, %98 : vector<8x128xf32>
    %cst_47 = arith.constant 0.000000e+00 : f32
    %100 = vector.broadcast %cst_47 : f32 to vector<8x128xf32>
    %101 = arith.subf %100, %99 : vector<8x128xf32>
    %102 = math.exp %101 : vector<8x128xf32>
    %cst_48 = arith.constant 1.000000e+00 : f32
    %103 = vector.broadcast %cst_48 : f32 to vector<8x128xf32>
    %104 = arith.addf %103, %102 : vector<8x128xf32>
    %cst_49 = arith.constant 1.000000e+00 : f32
    %105 = vector.broadcast %cst_49 : f32 to vector<8x128xf32>
    %106 = arith.divf %105, %104 : vector<8x128xf32>
    %107 = arith.mulf %99, %106 : vector<8x128xf32>
    %108 = arith.truncf %107 : vector<8x128xf32> to vector<8x128xbf16>
    %c0_50 = arith.constant 0 : index
    %c0_51 = arith.constant 0 : index
    %109 = vector.load %arg12[%c0_50, %c0_51] : memref<128x128xbf16, #tpu.memory_space<vmem>>, vector<128x128xbf16>
    %cst_52 = arith.constant dense<0.000000e+00> : vector<8x128xf32>
    %110 = tpu.matmul %108, %109, %cst_52 {dimension_numbers = #tpu.dot_dimension_numbers<[1], [0], [0], [1], [0, 0, 1, 1], [], []>} : vector<8x128xbf16>, vector<128x128xbf16>, vector<8x128xf32> -> vector<8x128xf32>
    %c0_53 = arith.constant 0 : index
    %c0_54 = arith.constant 0 : index
    %111 = vector.load %arg13[%c0_53, %c0_54] : memref<1x128xf32, #tpu.memory_space<vmem>>, vector<1x128xf32>
    %112 = vector.broadcast %111 : vector<1x128xf32> to vector<8x128xf32>
    %113 = arith.addf %110, %112 : vector<8x128xf32>
    %114 = arith.addf %1, %113 : vector<8x128xf32>
    %c0_55 = arith.constant 0 : index
    %c0_56 = arith.constant 0 : index
    %c0_57 = arith.constant 0 : index
    %115 = vector.load %arg14[%c0_55, %c0_56, %c0_57] : memref<1x8x128xf32, #tpu.memory_space<vmem>>, vector<1x8x128xf32>
    %116 = vector.shape_cast %115 : vector<1x8x128xf32> to vector<8x128xf32>
    %117 = vector.shape_cast %114 : vector<8x128xf32> to vector<1x8x128xf32>
    tpu.vector_store %arg14[%c0_55, %c0_56, %c0_57], %117 {strides = array<i32>} : memref<1x8x128xf32, #tpu.memory_space<vmem>>, vector<1x8x128xf32>,
    return
  }
  func.func @transform_0(%arg0: i32, %arg1: i32) -> (i32, i32, i32) {
    %c0_i32 = arith.constant 0 : i32
    %c0_i32_0 = arith.constant 0 : i32
    return %arg0, %arg1, %c0_i32 : i32, i32, i32
  }
  func.func @transform_1(%arg0: i32, %arg1: i32) -> (i32, i32, i32) {
    %c0_i32 = arith.constant 0 : i32
    %c0_i32_0 = arith.constant 0 : i32
    %c0_i32_1 = arith.constant 0 : i32
    return %arg0, %c0_i32, %c0_i32_0 : i32, i32, i32
  }
  func.func @transform_2(%arg0: i32, %arg1: i32) -> (i32, i32) {
    %c0_i32 = arith.constant 0 : i32
    %c0_i32_0 = arith.constant 0 : i32
    %c0_i32_1 = arith.constant 0 : i32
    return %c0_i32, %c0_i32_0 : i32, i32
  }
  func.func @transform_3(%arg0: i32, %arg1: i32) -> (i32, i32) {
    %c0_i32 = arith.constant 0 : i32
    %c0_i32_0 = arith.constant 0 : i32
    %c0_i32_1 = arith.constant 0 : i32
    return %c0_i32, %c0_i32_0 : i32, i32
  }
  func.func @transform_4(%arg0: i32, %arg1: i32) -> (i32, i32) {
    %c0_i32 = arith.constant 0 : i32
    %c0_i32_0 = arith.constant 0 : i32
    %c0_i32_1 = arith.constant 0 : i32
    return %c0_i32, %c0_i32_0 : i32, i32
  }
  func.func @transform_5(%arg0: i32, %arg1: i32) -> (i32, i32) {
    %c0_i32 = arith.constant 0 : i32
    %c0_i32_0 = arith.constant 0 : i32
    %c0_i32_1 = arith.constant 0 : i32
    return %c0_i32, %c0_i32_0 : i32, i32
  }
  func.func @transform_6(%arg0: i32, %arg1: i32) -> (i32, i32) {
    %c0_i32 = arith.constant 0 : i32
    %c0_i32_0 = arith.constant 0 : i32
    %c0_i32_1 = arith.constant 0 : i32
    return %c0_i32, %c0_i32_0 : i32, i32
  }
  func.func @transform_7(%arg0: i32, %arg1: i32) -> (i32, i32) {
    %c0_i32 = arith.constant 0 : i32
    %c0_i32_0 = arith.constant 0 : i32
    %c0_i32_1 = arith.constant 0 : i32
    return %c0_i32, %c0_i32_0 : i32, i32
  }
  func.func @transform_8(%arg0: i32, %arg1: i32) -> (i32, i32) {
    %c0_i32 = arith.constant 0 : i32
    %c0_i32_0 = arith.constant 0 : i32
    %c0_i32_1 = arith.constant 0 : i32
    return %c0_i32, %c0_i32_0 : i32, i32
  }
  func.func @transform_9(%arg0: i32, %arg1: i32) -> (i32, i32) {
    %c0_i32 = arith.constant 0 : i32
    %c0_i32_0 = arith.constant 0 : i32
    %c0_i32_1 = arith.constant 0 : i32
    return %c0_i32, %c0_i32_0 : i32, i32
  }
  func.func @transform_10(%arg0: i32, %arg1: i32) -> (i32, i32) {
    %c0_i32 = arith.constant 0 : i32
    %c0_i32_0 = arith.constant 0 : i32
    %c0_i32_1 = arith.constant 0 : i32
    return %c0_i32, %c0_i32_0 : i32, i32
  }
  func.func @transform_11(%arg0: i32, %arg1: i32) -> (i32, i32) {
    %c0_i32 = arith.constant 0 : i32
    %c0_i32_0 = arith.constant 0 : i32
    %c0_i32_1 = arith.constant 0 : i32
    return %c0_i32, %c0_i32_0 : i32, i32
  }
  func.func @transform_12(%arg0: i32, %arg1: i32) -> (i32, i32, i32) {
    %c0_i32 = arith.constant 0 : i32
    %c0_i32_0 = arith.constant 0 : i32
    return %arg0, %arg1, %c0_i32 : i32, i32, i32
  }
}

</mosaic_0001>

<llo_original>
// kernel: sffn_forward.1
$region0: #{sffn_forward.1}
  #allocation0 [shape = 'u32[]', space=smem, size = 0x4, offset = 0x4, fixed_abs, tag = 'smem constant byte address 0x4 - core index']
  #allocation1 [shape = 'u32[144,128]{1,0:T(1,128)}', space=vmem, size = 0x12000, scoped, tag = 'internal scratch']
  %s0 = inlined_call_operand.hbm [shape: f32[2,8,128], index: 0, kind: input, shape index: {}]
  %s1 = inlined_call_operand.vmem [shape: f32[2,1,32], index: 1, kind: input, shape index: {}]
  %s2 = inlined_call_operand.hbm [shape: bf16[128,256], index: 2, kind: input, shape index: {}]
  %s3 = inlined_call_operand.vmem [shape: f32[1,256], index: 3, kind: input, shape index: {}]
  %s4 = inlined_call_operand.hbm [shape: bf16[256,128], index: 4, kind: input, shape index: {}]
  %s5 = inlined_call_operand.vmem [shape: f32[1,128], index: 5, kind: input, shape index: {}]
  %s6 = inlined_call_operand.hbm [shape: f32[32,256], index: 6, kind: input, shape index: {}]
  %s7 = inlined_call_operand.vmem [shape: f32[1,256], index: 7, kind: input, shape index: {}]
  %s8 = inlined_call_operand.vmem [shape: f32[1,128], index: 8, kind: input, shape index: {}]
  %s9 = inlined_call_operand.vmem [shape: f32[1,128], index: 9, kind: input, shape index: {}]
  %s10 = inlined_call_operand.hbm [shape: bf16[128,128], index: 10, kind: input, shape index: {}]
  %s11 = inlined_call_operand.vmem [shape: f32[1,128], index: 11, kind: input, shape index: {}]
  %s12 = inlined_call_operand.hbm [shape: f32[2,8,128], index: 12, kind: output, shape index: {}]
  %s13 = sld [smem:[#allocation0]]
  $region101: #{sffn_forward.1} parent=0
    _
  %s15 = ssub.s32 1, %s13
  %s16 = scalar_select 0, %s15, %s13
  $region1: #{sffn_forward.1} parent=0
    #allocation2 [shape = 'u8[8192]{0}', space=vmem, size = 0x2000, scoped, tag = 'input window, operand 0']
    #allocation3 [shape = 's32[2]{0}', space=sflag, size = 0x8, scoped, tag = 'scoped memory for sffn_forward.1']
    #allocation4 [shape = 's32[2]{0}', space=sflag, size = 0x8, scoped, tag = 'scoped memory for sffn_forward.1']
    #allocation5 [shape = 'u8[65536]{0}', space=vmem, size = 0x10000, scoped, tag = 'input window, operand 2, single buffered']
    #allocation6 [shape = 's32[1]{0}', space=sflag, size = 0x4, scoped, tag = 'scoped memory for sffn_forward.1']
    #allocation7 [shape = 'u8[65536]{0}', space=vmem, size = 0x10000, scoped, tag = 'input window, operand 4, single buffered']
    #allocation8 [shape = 'u8[32768]{0}', space=vmem, size = 0x8000, scoped, tag = 'input window, operand 6, single buffered']
    #allocation9 [shape = 's32[1]{0}', space=sflag, size = 0x4, scoped, tag = 'scoped memory for sffn_forward.1']
    #allocation10 [shape = 'u8[32768]{0}', space=vmem, size = 0x8000, scoped, tag = 'input window, operand 10, single buffered']
    #allocation11 [shape = 'u8[8192]{0}', space=vmem, size = 0x2000, scoped, tag = 'output window, operand 0']
    %17 = vsyncpa [#allocation3], 0
    %s18 = scalar_lea.sflag [#allocation3], 1
    %19 = vsyncpa %s18, 0
    %20 = vsyncpa [#allocation6], 0
    %21 = vsyncpa [#allocation9], 0
    %22 = vsyncpa [#allocation4], 0
    %s23 = scalar_lea.sflag [#allocation4], 1
    %24 = vsyncpa %s23, 0
    loop: start=0, step=1, limit=4
    $region2: #{sffn_forward.1} parent=1 // loop_pre_header
      _
    $region3: #{sffn_forward.1} parent=1 // loop_header
      %s26 = sphi 0, %s30
      %p27 = scmp.ge.s32.totalorder %s26, 4
      %s33 = sphi 0, %s45
      %s34 = sphi 0, %s41
      %s35 = sphi 0, %s33
      %s36 = sphi 0, %s34
      %s37 = sphi 0, %s35
      %s38 = sphi 0, %s36
      %s50 = sphi 0, %s52
      %s53 = sphi 0, %s50
      %s54 = sphi 0, %s53
      %s70 = sphi 0, %s54
      %s76 = sphi 0, %s78
      %s79 = sphi 0, %s76
      %s80 = sphi 0, %s79
      %s96 = sphi 0, %s80
      %s100 = sphi 0, %s100
      %s102 = sphi 0, %s100
      %s103 = sphi 0, %s102
      %s117 = sphi 0, %s103
      %s121 = sphi 0, %s121
      %s123 = sphi 0, %s121
      %s124 = sphi 0, %s123
      %s138 = sphi 0, %s124
      %s142 = sphi 0, %s142
      %s144 = sphi 0, %s142
      %s145 = sphi 0, %s144
      %s159 = sphi 0, %s145
      %s163 = sphi 0, %s163
      %s165 = sphi 0, %s163
      %s166 = sphi 0, %s165
      %s180 = sphi 0, %s166
      %s184 = sphi 0, %s184
      %s186 = sphi 0, %s184
      %s187 = sphi 0, %s186
      %s201 = sphi 0, %s187
      %s205 = sphi 0, %s205
      %s207 = sphi 0, %s205
      %s208 = sphi 0, %s207
      %s222 = sphi 0, %s208
      %s226 = sphi 0, %s226
      %s228 = sphi 0, %s226
      %s229 = sphi 0, %s228
      %s243 = sphi 0, %s229
      %s247 = sphi 0, %s247
      %s249 = sphi 0, %s247
      %s250 = sphi 0, %s249
      %s264 = sphi 0, %s250
      %s268 = sphi 0, %s268
      %s270 = sphi 0, %s268
      %s271 = sphi 0, %s270
      %s285 = sphi 0, %s271
      %s289 = sphi 0, %s289
      %s291 = sphi 0, %s289
      %s292 = sphi 0, %s291
      %s306 = sphi 0, %s292
      %s314 = sphi 0, %s316
      %s317 = sphi 0, %s314
      %s318 = sphi 0, %s317
      %s334 = sphi 0, %s318
    $region4: #{sffn_forward.1} parent=1 // loop_header_branch
      %29 = sbr.rel (%p27) target = $region8
    $region5: #{sffn_forward.1} parent=1 // loop_body
      %s31 = ssub.s32 %s26, 1
      %s32 = ssub.s32 %s26, 2
      %s39 = sadd.s32 1, %s34
      %p40 = scmp.ge.s32.totalorder %s39, 1
      %s41 = scalar_select %p40, 0, %s39
      %s42 = sadd.s32 1, %s33
      %s43 = scalar_select %p40, %s42, %s33
      %p44 = scmp.ge.s32.totalorder %s43, 2
      %s45 = scalar_select %p44, 0, %s43
      %s46 = ssub.s32 %s33, %s45
      %s47 = ssub.s32 %s34, %s41
      %s48 = sor.u32 %s46, %s47
      %p49 = scmp.eq.s32.totalorder %s48, 0
      %s51 = sadd.s32 %s50, 1
      %s52 = scalar_select %p49, %s50, %s51
      %p55 = pneg %p49
      %p56 = scmp.eq.s32.totalorder %s26, 1
      %p57 = por %p55, %p56
      %p58 = scmp.ne.s32.totalorder %s50, %s53
      %p59 = scmp.eq.s32.totalorder %s26, 0
      %p60 = por %p58, %p59
      %p61 = scmp.ne.s32.totalorder %s50, %s53
      %p62 = scmp.eq.s32.totalorder %s31, 1
      %p63 = por %p61, %p62
      %p64 = scmp.ne.s32.totalorder %s53, %s54
      %p65 = scmp.eq.s32.totalorder %s31, 0
      %p66 = por %p64, %p65
      %p67 = scmp.ne.s32.totalorder %s53, %s54
      %p68 = scmp.eq.s32.totalorder %s32, 1
      %p69 = por %p67, %p68
      %p71 = scmp.ne.s32.totalorder %s54, %s70
      %p72 = scmp.eq.s32.totalorder %s32, 0
      %p73 = por %p71, %p72
      %s74 = ssub.s32 %s33, %s45
      %p75 = scmp.eq.s32.totalorder %s74, 0
      %s77 = sadd.s32 %s76, 1
      %s78 = scalar_select %p75, %s76, %s77
      %p81 = pneg %p75
      %p82 = scmp.eq.s32.totalorder %s26, 1
      %p83 = por %p81, %p82
      %p84 = scmp.ne.s32.totalorder %s76, %s79
      %p85 = scmp.eq.s32.totalorder %s26, 0
      %p86 = por %p84, %p85
      %p87 = scmp.ne.s32.totalorder %s76, %s79
      %p88 = scmp.eq.s32.totalorder %s31, 1
      %p89 = por %p87, %p88
      %p90 = scmp.ne.s32.totalorder %s79, %s80
      %p91 = scmp.eq.s32.totalorder %s31, 0
      %p92 = por %p90, %p91
      %p93 = scmp.ne.s32.totalorder %s79, %s80
      %p94 = scmp.eq.s32.totalorder %s32, 1
      %p95 = por %p93, %p94
      %p97 = scmp.ne.s32.totalorder %s80, %s96
      %p98 = scmp.eq.s32.totalorder %s32, 0
      %p99 = por %p97, %p98
      %s101 = sadd.s32 %s100, 1
      %p104 = scmp.eq.s32.totalorder %s26, 1
      %p105 = scmp.ne.s32.totalorder %s100, %s102
      %p106 = scmp.eq.s32.totalorder %s26, 0
      %p107 = por %p105, %p106
      %p108 = scmp.ne.s32.totalorder %s100, %s102
      %p109 = scmp.eq.s32.totalorder %s31, 1
      %p110 = por %p108, %p109
      %p111 = scmp.ne.s32.totalorder %s102, %s103
      %p112 = scmp.eq.s32.totalorder %s31, 0
      %p113 = por %p111, %p112
      %p114 = scmp.ne.s32.totalorder %s102, %s103
      %p115 = scmp.eq.s32.totalorder %s32, 1
      %p116 = por %p114, %p115
      %p118 = scmp.ne.s32.totalorder %s103, %s117
      %p119 = scmp.eq.s32.totalorder %s32, 0
      %p120 = por %p118, %p119
      %s122 = sadd.s32 %s121, 1
      %p125 = scmp.eq.s32.totalorder %s26, 1
      %p126 = scmp.ne.s32.totalorder %s121, %s123
      %p127 = scmp.eq.s32.totalorder %s26, 0
      %p128 = por %p126, %p127
      %p129 = scmp.ne.s32.totalorder %s121, %s123
      %p130 = scmp.eq.s32.totalorder %s31, 1
      %p131 = por %p129, %p130
      %p132 = scmp.ne.s32.totalorder %s123, %s124
      %p133 = scmp.eq.s32.totalorder %s31, 0
      %p134 = por %p132, %p133
      %p135 = scmp.ne.s32.totalorder %s123, %s124
      %p136 = scmp.eq.s32.totalorder %s32, 1
      %p137 = por %p135, %p136
      %p139 = scmp.ne.s32.totalorder %s124, %s138
      %p140 = scmp.eq.s32.totalorder %s32, 0
      %p141 = por %p139, %p140
      %s143 = sadd.s32 %s142, 1
      %p146 = scmp.eq.s32.totalorder %s26, 1
      %p147 = scmp.ne.s32.totalorder %s142, %s144
      %p148 = scmp.eq.s32.totalorder %s26, 0
      %p149 = por %p147, %p148
      %p150 = scmp.ne.s32.totalorder %s142, %s144
      %p151 = scmp.eq.s32.totalorder %s31, 1
      %p152 = por %p150, %p151
      %p153 = scmp.ne.s32.totalorder %s144, %s145
      %p154 = scmp.eq.s32.totalorder %s31, 0
      %p155 = por %p153, %p154
      %p156 = scmp.ne.s32.totalorder %s144, %s145
      %p157 = scmp.eq.s32.totalorder %s32, 1
      %p158 = por %p156, %p157
      %p160 = scmp.ne.s32.totalorder %s145, %s159
      %p161 = scmp.eq.s32.totalorder %s32, 0
      %p162 = por %p160, %p161
      %s164 = sadd.s32 %s163, 1
      %p167 = scmp.eq.s32.totalorder %s26, 1
      %p168 = scmp.ne.s32.totalorder %s163, %s165
      %p169 = scmp.eq.s32.totalorder %s26, 0
      %p170 = por %p168, %p169
      %p171 = scmp.ne.s32.totalorder %s163, %s165
      %p172 = scmp.eq.s32.totalorder %s31, 1
      %p173 = por %p171, %p172
      %p174 = scmp.ne.s32.totalorder %s165, %s166
      %p175 = scmp.eq.s32.totalorder %s31, 0
      %p176 = por %p174, %p175
      %p177 = scmp.ne.s32.totalorder %s165, %s166
      %p178 = scmp.eq.s32.totalorder %s32, 1
      %p179 = por %p177, %p178
      %p181 = scmp.ne.s32.totalorder %s166, %s180
      %p182 = scmp.eq.s32.totalorder %s32, 0
      %p183 = por %p181, %p182
      %s185 = sadd.s32 %s184, 1
      %p188 = scmp.eq.s32.totalorder %s26, 1
      %p189 = scmp.ne.s32.totalorder %s184, %s186
      %p190 = scmp.eq.s32.totalorder %s26, 0
      %p191 = por %p189, %p190
      %p192 = scmp.ne.s32.totalorder %s184, %s186
      %p193 = scmp.eq.s32.totalorder %s31, 1
      %p194 = por %p192, %p193
      %p195 = scmp.ne.s32.totalorder %s186, %s187
      %p196 = scmp.eq.s32.totalorder %s31, 0
      %p197 = por %p195, %p196
      %p198 = scmp.ne.s32.totalorder %s186, %s187
      %p199 = scmp.eq.s32.totalorder %s32, 1
      %p200 = por %p198, %p199
      %p202 = scmp.ne.s32.totalorder %s187, %s201
      %p203 = scmp.eq.s32.totalorder %s32, 0
      %p204 = por %p202, %p203
      %s206 = sadd.s32 %s205, 1
      %p209 = scmp.eq.s32.totalorder %s26, 1
      %p210 = scmp.ne.s32.totalorder %s205, %s207
      %p211 = scmp.eq.s32.totalorder %s26, 0
      %p212 = por %p210, %p211
      %p213 = scmp.ne.s32.totalorder %s205, %s207
      %p214 = scmp.eq.s32.totalorder %s31, 1
      %p215 = por %p213, %p214
      %p216 = scmp.ne.s32.totalorder %s207, %s208
      %p217 = scmp.eq.s32.totalorder %s31, 0
      %p218 = por %p216, %p217
      %p219 = scmp.ne.s32.totalorder %s207, %s208
      %p220 = scmp.eq.s32.totalorder %s32, 1
      %p221 = por %p219, %p220
      %p223 = scmp.ne.s32.totalorder %s208, %s222
      %p224 = scmp.eq.s32.totalorder %s32, 0
      %p225 = por %p223, %p224
      %s227 = sadd.s32 %s226, 1
      %p230 = scmp.eq.s32.totalorder %s26, 1
      %p231 = scmp.ne.s32.totalorder %s226, %s228
      %p232 = scmp.eq.s32.totalorder %s26, 0
      %p233 = por %p231, %p232
      %p234 = scmp.ne.s32.totalorder %s226, %s228
      %p235 = scmp.eq.s32.totalorder %s31, 1
      %p236 = por %p234, %p235
      %p237 = scmp.ne.s32.totalorder %s228, %s229
      %p238 = scmp.eq.s32.totalorder %s31, 0
      %p239 = por %p237, %p238
      %p240 = scmp.ne.s32.totalorder %s228, %s229
      %p241 = scmp.eq.s32.totalorder %s32, 1
      %p242 = por %p240, %p241
      %p244 = scmp.ne.s32.totalorder %s229, %s243
      %p245 = scmp.eq.s32.totalorder %s32, 0
      %p246 = por %p244, %p245
      %s248 = sadd.s32 %s247, 1
      %p251 = scmp.eq.s32.totalorder %s26, 1
      %p252 = scmp.ne.s32.totalorder %s247, %s249
      %p253 = scmp.eq.s32.totalorder %s26, 0
      %p254 = por %p252, %p253
      %p255 = scmp.ne.s32.totalorder %s247, %s249
      %p256 = scmp.eq.s32.totalorder %s31, 1
      %p257 = por %p255, %p256
      %p258 = scmp.ne.s32.totalorder %s249, %s250
      %p259 = scmp.eq.s32.totalorder %s31, 0
      %p260 = por %p258, %p259
      %p261 = scmp.ne.s32.totalorder %s249, %s250
      %p262 = scmp.eq.s32.totalorder %s32, 1
      %p263 = por %p261, %p262
      %p265 = scmp.ne.s32.totalorder %s250, %s264
      %p266 = scmp.eq.s32.totalorder %s32, 0
      %p267 = por %p265, %p266
      %s269 = sadd.s32 %s268, 1
      %p272 = scmp.eq.s32.totalorder %s26, 1
      %p273 = scmp.ne.s32.totalorder %s268, %s270
      %p274 = scmp.eq.s32.totalorder %s26, 0
      %p275 = por %p273, %p274
      %p276 = scmp.ne.s32.totalorder %s268, %s270
      %p277 = scmp.eq.s32.totalorder %s31, 1
      %p278 = por %p276, %p277
      %p279 = scmp.ne.s32.totalorder %s270, %s271
      %p280 = scmp.eq.s32.totalorder %s31, 0
      %p281 = por %p279, %p280
      %p282 = scmp.ne.s32.totalorder %s270, %s271
      %p283 = scmp.eq.s32.totalorder %s32, 1
      %p284 = por %p282, %p283
      %p286 = scmp.ne.s32.totalorder %s271, %s285
      %p287 = scmp.eq.s32.totalorder %s32, 0
      %p288 = por %p286, %p287
      %s290 = sadd.s32 %s289, 1
      %p293 = scmp.eq.s32.totalorder %s26, 1
      %p294 = scmp.ne.s32.totalorder %s289, %s291
      %p295 = scmp.eq.s32.totalorder %s26, 0
      %p296 = por %p294, %p295
      %p297 = scmp.ne.s32.totalorder %s289, %s291
      %p298 = scmp.eq.s32.totalorder %s31, 1
      %p299 = por %p297, %p298
      %p300 = scmp.ne.s32.totalorder %s291, %s292
      %p301 = scmp.eq.s32.totalorder %s31, 0
      %p302 = por %p300, %p301
      %p303 = scmp.ne.s32.totalorder %s291, %s292
      %p304 = scmp.eq.s32.totalorder %s32, 1
      %p305 = por %p303, %p304
      %p307 = scmp.ne.s32.totalorder %s292, %s306
      %p308 = scmp.eq.s32.totalorder %s32, 0
      %p309 = por %p307, %p308
      %s310 = ssub.s32 %s33, %s45
      %s311 = ssub.s32 %s34, %s41
      %s312 = sor.u32 %s310, %s311
      %p313 = scmp.eq.s32.totalorder %s312, 0
      %s315 = sadd.s32 %s314, 1
      %s316 = scalar_select %p313, %s314, %s315
      %p319 = pneg %p313
      %p320 = scmp.eq.s32.totalorder %s26, 1
      %p321 = por %p319, %p320
      %p322 = scmp.ne.s32.totalorder %s314, %s317
      %p323 = scmp.eq.s32.totalorder %s26, 0
      %p324 = por %p322, %p323
      %p325 = scmp.ne.s32.totalorder %s314, %s317
      %p326 = scmp.eq.s32.totalorder %s31, 1
      %p327 = por %p325, %p326
      %p328 = scmp.ne.s32.totalorder %s317, %s318
      %p329 = scmp.eq.s32.totalorder %s31, 0
      %p330 = por %p328, %p329
      %p331 = scmp.ne.s32.totalorder %s317, %s318
      %p332 = scmp.eq.s32.totalorder %s32, 1
      %p333 = por %p331, %p332
      %p335 = scmp.ne.s32.totalorder %s318, %s334
      %p336 = scmp.eq.s32.totalorder %s32, 0
      %p337 = por %p335, %p336
      %p338 = scmp.le.s32.totalorder 1, %s26
      %p339 = scmp.lt.s32.totalorder %s26, 3
      %p340 = pnand %p338, %p339
      %p341 = pneg %p340
      // Predicated region
      $region9: #{sffn_forward.1} parent=5 // pred_check
        _
      $region10: #{sffn_forward.1} parent=5 // pred_check_branch
        %343 = sbr.rel (%p340) target = $region12
      $region11: #{sffn_forward.1} parent=5 // pred_region
        %s344 = ssub.s32 %s26, 1
        // Predicated region
        $region13: #{sffn_forward.1} parent=11 // pred_check
          %p345 = pneg %p113
        $region14: #{sffn_forward.1} parent=11 // pred_check_branch
          %347 = sbr.rel (%p345) target = $region16
        $region15: #{sffn_forward.1} parent=11 // pred_region
          %s349 = ssub.s32 2048, 2048
          %350 = vsyncadd [#allocation6], %s349
          %s351 = sshll.u32 [#allocation5], 4
          %s352 = int_to_ptr.vmem [resolvable:$true] %s351
          %357 = dma.hbm_to_vmem [thread:$0]  %s2, 2048, %s352, [#allocation6], 128, 128, 8
        $region16: #{sffn_forward.1} parent=11 // pred_fallthru
          _
        // Predicated region
        $region17: #{sffn_forward.1} parent=11 // pred_check
          %p358 = pneg %p134
        $region18: #{sffn_forward.1} parent=11 // pred_check_branch
          %360 = sbr.rel (%p358) target = $region20
        $region19: #{sffn_forward.1} parent=11 // pred_region
          _
        $region20: #{sffn_forward.1} parent=11 // pred_fallthru
          _
        // Predicated region
        $region21: #{sffn_forward.1} parent=11 // pred_check
          %p361 = pneg %p155
        $region22: #{sffn_forward.1} parent=11 // pred_check_branch
          %363 = sbr.rel (%p361) target = $region24
        $region23: #{sffn_forward.1} parent=11 // pred_region
          %s365 = ssub.s32 2048, 2048
          %366 = vsyncadd [#allocation6], %s365
          %s367 = sshll.u32 [#allocation7], 4
          %s368 = int_to_ptr.vmem [resolvable:$true] %s367
          %373 = dma.hbm_to_vmem [thread:$0]  %s4, 2048, %s368, [#allocation6], 64, 64, 4
        $region24: #{sffn_forward.1} parent=11 // pred_fallthru
          _
        // Predicated region
        $region25: #{sffn_forward.1} parent=11 // pred_check
          %p374 = pneg %p176
        $region26: #{sffn_forward.1} parent=11 // pred_check_branch
          %376 = sbr.rel (%p374) target = $region28
        $region27: #{sffn_forward.1} parent=11 // pred_region
          _
        $region28: #{sffn_forward.1} parent=11 // pred_fallthru
          _
        // Predicated region
        $region29: #{sffn_forward.1} parent=11 // pred_check
          %p377 = pneg %p197
        $region30: #{sffn_forward.1} parent=11 // pred_check_branch
          %379 = sbr.rel (%p377) target = $region32
        $region31: #{sffn_forward.1} parent=11 // pred_region
          %s381 = ssub.s32 1024, 1024
          %382 = vsyncadd [#allocation9], %s381
          %s383 = sshll.u32 [#allocation8], 4
          %s384 = int_to_ptr.vmem [resolvable:$true] %s383
          %389 = dma.hbm_to_vmem [thread:$0]  %s6, 1024, %s384, [#allocation9], 256, 256, 16
        $region32: #{sffn_forward.1} parent=11 // pred_fallthru
          _
        // Predicated region
        $region33: #{sffn_forward.1} parent=11 // pred_check
          %p390 = pneg %p218
        $region34: #{sffn_forward.1} parent=11 // pred_check_branch
          %392 = sbr.rel (%p390) target = $region36
        $region35: #{sffn_forward.1} parent=11 // pred_region
          _
        $region36: #{sffn_forward.1} parent=11 // pred_fallthru
          _
        // Predicated region
        $region37: #{sffn_forward.1} parent=11 // pred_check
          %p393 = pneg %p239
        $region38: #{sffn_forward.1} parent=11 // pred_check_branch
          %395 = sbr.rel (%p393) target = $region40
        $region39: #{sffn_forward.1} parent=11 // pred_region
          _
        $region40: #{sffn_forward.1} parent=11 // pred_fallthru
          _
        // Predicated region
        $region41: #{sffn_forward.1} parent=11 // pred_check
          %p396 = pneg %p260
        $region42: #{sffn_forward.1} parent=11 // pred_check_branch
          %398 = sbr.rel (%p396) target = $region44
        $region43: #{sffn_forward.1} parent=11 // pred_region
          _
        $region44: #{sffn_forward.1} parent=11 // pred_fallthru
          _
        // Predicated region
        $region45: #{sffn_forward.1} parent=11 // pred_check
          %p399 = pneg %p281
        $region46: #{sffn_forward.1} parent=11 // pred_check_branch
          %401 = sbr.rel (%p399) target = $region48
        $region47: #{sffn_forward.1} parent=11 // pred_region
          %s403 = ssub.s32 1024, 1024
          %404 = vsyncadd [#allocation9], %s403
          %s405 = sshll.u32 [#allocation10], 4
          %s406 = int_to_ptr.vmem [resolvable:$true] %s405
          %411 = dma.hbm_to_vmem [thread:$0]  %s10, 1024, %s406, [#allocation9], 64, 64, 4
        $region48: #{sffn_forward.1} parent=11 // pred_fallthru
          _
        // Predicated region
        $region49: #{sffn_forward.1} parent=11 // pred_check
          %p412 = pneg %p302
        $region50: #{sffn_forward.1} parent=11 // pred_check_branch
          %414 = sbr.rel (%p412) target = $region52
        $region51: #{sffn_forward.1} parent=11 // pred_region
          _
        $region52: #{sffn_forward.1} parent=11 // pred_fallthru
          _
      $region12: #{sffn_forward.1} parent=5 // pred_fallthru
        _
      %p415 = scmp.lt.s32.totalorder %s26, 2
      // Predicated region
      $region53: #{sffn_forward.1} parent=5 // pred_check
        %p416 = pneg %p415
      $region54: #{sffn_forward.1} parent=5 // pred_check_branch
        %418 = sbr.rel (%p416) target = $region56
      $region55: #{sffn_forward.1} parent=5 // pred_region
        // Predicated region
        $region57: #{sffn_forward.1} parent=55 // pred_check
          %p419 = pneg %p60
        $region58: #{sffn_forward.1} parent=55 // pred_check_branch
          %421 = sbr.rel (%p419) target = $region60
        $region59: #{sffn_forward.1} parent=55 // pred_region
          %s422 = sand.u32 %s50, 1
          %s423 = scalar_lea.sflag [#allocation3], %s422
          %s424 = sand.u32 %s50, 1
          %s425 = smul.addr %s424, 8
          %s426 = scalar_lea.vmem [#allocation2], %s425
          %s428 = ssub.s32 128, 128
          %429 = vsyncadd %s423, %s428
          %s430 = sadd.s32 %s34, %s33
          %s431 = smul.addr %s430, 128
          %s432 = scalar_lea.hbm %s0, %s431
          %s434 = sshll.u32 %s426, 4
          %s435 = int_to_ptr.vmem [resolvable:$true] %s434
          %437 = dma.hbm_to_vmem [thread:$0]  %s432, 128, %s435, %s423
        $region60: #{sffn_forward.1} parent=55 // pred_fallthru
          _
        // Predicated region
        $region61: #{sffn_forward.1} parent=55 // pred_check
          %p438 = pneg %p86
        $region62: #{sffn_forward.1} parent=55 // pred_check_branch
          %440 = sbr.rel (%p438) target = $region64
        $region63: #{sffn_forward.1} parent=55 // pred_region
          %p441 = scmp.lt.s32.totalorder %s33, 1
          %s442 = scalar_select %p441, %s33, 1
          %s443 = scalar_lea.vmem %s1, %s442
        $region64: #{sffn_forward.1} parent=55 // pred_fallthru
          _
      $region56: #{sffn_forward.1} parent=5 // pred_fallthru
        _
      %p444 = scmp.le.s32.totalorder 1, %s26
      %p445 = scmp.lt.s32.totalorder %s26, 3
      %p446 = pnand %p444, %p445
      %p447 = pneg %p446
      // Predicated region
      $region65: #{sffn_forward.1} parent=5 // pred_check
        _
      $region66: #{sffn_forward.1} parent=5 // pred_check_branch
        %449 = sbr.rel (%p446) target = $region68
      $region67: #{sffn_forward.1} parent=5 // pred_region
        %s450 = ssub.s32 %s26, 1
        %s451 = sand.u32 %s53, 1
        %s452 = scalar_lea.sflag [#allocation3], %s451
        %s453 = sand.u32 %s53, 1
        %s454 = smul.addr %s453, 8
        %s455 = scalar_lea.vmem [#allocation2], %s454
        // Predicated region
        $region69: #{sffn_forward.1} parent=67 // pred_check
          %p456 = pneg %p66
        $region70: #{sffn_forward.1} parent=67 // pred_check_branch
          %458 = sbr.rel (%p456) target = $region72
        $region71: #{sffn_forward.1} parent=67 // pred_region
          %459 = dma.done %s452, 128
        $region72: #{sffn_forward.1} parent=67 // pred_fallthru
          _
        // Predicated region
        $region73: #{sffn_forward.1} parent=67 // pred_check
          %p460 = pneg %p113
        $region74: #{sffn_forward.1} parent=67 // pred_check_branch
          %462 = sbr.rel (%p460) target = $region76
        $region75: #{sffn_forward.1} parent=67 // pred_region
          %463 = dma.done [#allocation6], 2048
        $region76: #{sffn_forward.1} parent=67 // pred_fallthru
          _
        // Predicated region
        $region77: #{sffn_forward.1} parent=67 // pred_check
          %p464 = pneg %p155
        $region78: #{sffn_forward.1} parent=67 // pred_check_branch
          %466 = sbr.rel (%p464) target = $region80
        $region79: #{sffn_forward.1} parent=67 // pred_region
          %467 = dma.done [#allocation6], 2048
        $region80: #{sffn_forward.1} parent=67 // pred_fallthru
          _
        // Predicated region
        $region81: #{sffn_forward.1} parent=67 // pred_check
          %p468 = pneg %p197
        $region82: #{sffn_forward.1} parent=67 // pred_check_branch
          %470 = sbr.rel (%p468) target = $region84
        $region83: #{sffn_forward.1} parent=67 // pred_region
          %471 = dma.done [#allocation9], 1024
        $region84: #{sffn_forward.1} parent=67 // pred_fallthru
          _
        // Predicated region
        $region85: #{sffn_forward.1} parent=67 // pred_check
          %p472 = pneg %p281
        $region86: #{sffn_forward.1} parent=67 // pred_check_branch
          %474 = sbr.rel (%p472) target = $region88
        $region87: #{sffn_forward.1} parent=67 // pred_region
          %475 = dma.done [#allocation9], 1024
        $region88: #{sffn_forward.1} parent=67 // pred_fallthru
          _
        %s476 = sand.u32 %s53, 1
        %s477 = scalar_lea.sflag [#allocation3], %s476
        %s478 = sand.u32 %s53, 1
        %s479 = smul.addr %s478, 8
        %s480 = scalar_lea.vmem [#allocation2], %s479
        %p481 = pneg %p66
        %p482 = pneg %p63
        %p483 = scmp.lt.s32.totalorder %s35, 1
        %s484 = scalar_select %p483, %s35, 1
        %s485 = scalar_lea.vmem %s1, %s484
        %p486 = pneg %p92
        %p487 = pneg %p89
        %p488 = pneg %p113
        %p489 = pneg %p110
        %p490 = pneg %p134
        %p491 = pneg %p131
        %p492 = pneg %p155
        %p493 = pneg %p152
        %p494 = pneg %p176
        %p495 = pneg %p173
        %p496 = pneg %p197
        %p497 = pneg %p194
        %p498 = pneg %p218
        %p499 = pneg %p215
        %p500 = pneg %p239
        %p501 = pneg %p236
        %p502 = pneg %p260
        %p503 = pneg %p257
        %p504 = pneg %p281
        %p505 = pneg %p278
        %p506 = pneg %p302
        %p507 = pneg %p299
        %p508 = pneg %p330
        %p509 = pneg %p327
        %s510 = sand.u32 %s317, 1
        %s511 = scalar_lea.sflag [#allocation4], %s510
        %s512 = sand.u32 %s317, 1
        %s513 = smul.addr %s512, 8
        %s514 = scalar_lea.vmem [#allocation11], %s513
        %p515 = scmp.lt.s32.totalorder %s35, 1
        %s516 = scalar_select %p515, %s35, 1
        %s517 = scalar_lea.vmem %s1, %s516
        %v519 = vld [vmem:[%s455] sm:$0xff]
        %v520 = vpack.c.bf16 %v519, %v519
        %v521 = vld [vmem:[#allocation5] sm:$0xff]
        %v522 = vld [vmem:[#allocation5 + $0x8] sm:$0xff]
        %v523 = vld [vmem:[#allocation5 + $0x10] sm:$0xff]
        %v524 = vld [vmem:[#allocation5 + $0x18] sm:$0xff]
        %v525 = vld [vmem:[#allocation5 + $0x20] sm:$0xff]
        %v526 = vld [vmem:[#allocation5 + $0x28] sm:$0xff]
        %v527 = vld [vmem:[#allocation5 + $0x30] sm:$0xff]
        %v528 = vld [vmem:[#allocation5 + $0x38] sm:$0xff]
        %v529 = vld [vmem:[#allocation5 + $0x40] sm:$0xff]
        %v530 = vld [vmem:[#allocation5 + $0x48] sm:$0xff]
        %v531 = vld [vmem:[#allocation5 + $0x50] sm:$0xff]
        %v532 = vld [vmem:[#allocation5 + $0x58] sm:$0xff]
        %v533 = vld [vmem:[#allocation5 + $0x60] sm:$0xff]
        %v534 = vld [vmem:[#allocation5 + $0x68] sm:$0xff]
        %v535 = vld [vmem:[#allocation5 + $0x70] sm:$0xff]
        %v536 = vld [vmem:[#allocation5 + $0x78] sm:$0xff]
        %v537 = vld [vmem:[%s3] sm:$0x3]
        %v539 = vlaneseq
        %v540 = vshrl.u32 %v539, 7
        %v541 = vsub.s32 0, %v540
        %v542 = vrot.slane %v537, %v541
        %v543 = vlaneseq
        %v544 = vshrl.u32 %v543, 7
        %v545 = vsub.s32 1, %v544
        %v546 = vrot.slane %v537, %v545
        %v565 = vunpack.c.l.b16 %v521
        %v566 = vunpack.c.h.b16 %v521
        %v567 = vunpack.c.l.b16 %v522
        %v568 = vunpack.c.h.b16 %v522
        %v569 = vunpack.c.l.b16 %v523
        %v570 = vunpack.c.h.b16 %v523
        %v571 = vunpack.c.l.b16 %v524
        %v572 = vunpack.c.h.b16 %v524
        %v573 = vunpack.c.l.b16 %v525
        %v574 = vunpack.c.h.b16 %v525
        %v575 = vunpack.c.l.b16 %v526
        %v576 = vunpack.c.h.b16 %v526
        %v577 = vunpack.c.l.b16 %v527
        %v578 = vunpack.c.h.b16 %v527
        %v579 = vunpack.c.l.b16 %v528
        %v580 = vunpack.c.h.b16 %v528
        %v581 = vunpack.c.l.b16 %v529
        %v582 = vunpack.c.h.b16 %v529
        %v583 = vunpack.c.l.b16 %v530
        %v584 = vunpack.c.h.b16 %v530
        %v585 = vunpack.c.l.b16 %v531
        %v586 = vunpack.c.h.b16 %v531
        %v587 = vunpack.c.l.b16 %v532
        %v588 = vunpack.c.h.b16 %v532
        %v589 = vunpack.c.l.b16 %v533
        %v590 = vunpack.c.h.b16 %v533
        %v591 = vunpack.c.l.b16 %v534
        %v592 = vunpack.c.h.b16 %v534
        %v593 = vunpack.c.l.b16 %v535
        %v594 = vunpack.c.h.b16 %v535
        %v595 = vunpack.c.l.b16 %v536
        %v596 = vunpack.c.h.b16 %v536
        %v597 = vpack.c.b16 %v567, %v565
        %v598 = vpack.c.b16 %v568, %v566
        %v599 = vpack.c.b16 %v571, %v569
        %v600 = vpack.c.b16 %v572, %v570
        %v601 = vpack.c.b16 %v575, %v573
        %v602 = vpack.c.b16 %v576, %v574
        %v603 = vpack.c.b16 %v579, %v577
        %v604 = vpack.c.b16 %v580, %v578
        %v605 = vpack.c.b16 %v583, %v581
        %v606 = vpack.c.b16 %v584, %v582
        %v607 = vpack.c.b16 %v587, %v585
        %v608 = vpack.c.b16 %v588, %v586
        %v609 = vpack.c.b16 %v591, %v589
        %v610 = vpack.c.b16 %v592, %v590
        %v611 = vpack.c.b16 %v595, %v593
        %v612 = vpack.c.b16 %v596, %v594
        %629 = vmatprep.subr.bf16.mxu0 %v612
        %630 = vmatpush1.bf16.msra.mxu0 %v611
        %631 = vmatprep.subr.bf16.mxu0 %v610
        %632 = vmatpush1.bf16.msra.mxu0 %v609
        %633 = vmatprep.subr.bf16.mxu0 %v608
        %634 = vmatpush1.bf16.msra.mxu0 %v607
        %635 = vmatprep.subr.bf16.mxu0 %v606
        %636 = vmatpush1.bf16.msra.mxu0 %v605
        %637 = vmatprep.subr.bf16.mxu0 %v604
        %638 = vmatpush1.bf16.msra.mxu0 %v603
        %639 = vmatprep.subr.bf16.mxu0 %v602
        %640 = vmatpush1.bf16.msra.mxu0 %v601
        %641 = vmatprep.subr.bf16.mxu0 %v600
        %642 = vmatpush1.bf16.msra.mxu0 %v599
        %643 = vmatprep.subr.bf16.mxu0 %v598
        %644 = vmatpush1.bf16.msra.mxu0 %v597
        %645 = vmatprep.subr.bf16.mxu0 0
        %646 = vmatpush2.bf16.msra.mxu0 0
        %647 = vmatprep.subr.bf16.mxu0 0
        %648 = vmatpush2.bf16.msra.mxu0 0
        %649 = vmatprep.subr.bf16.mxu0 0
        %650 = vmatpush2.bf16.msra.mxu0 0
        %651 = vmatprep.subr.bf16.mxu0 0
        %652 = vmatpush2.bf16.msra.mxu0 0
        %653 = vmatprep.subr.bf16.mxu0 0
        %654 = vmatpush2.bf16.msra.mxu0 0
        %655 = vmatprep.subr.bf16.mxu0 0
        %656 = vmatpush2.bf16.msra.mxu0 0
        %657 = vmatprep.subr.bf16.mxu0 0
        %658 = vmatpush2.bf16.msra.mxu0 0
        %659 = vmatprep.subr.bf16.mxu0 0
        %660 = vmatpush2.bf16.msra.mxu0 0
        %661 = vmatprep.mubr.bf16.mxu0 0
        %662 = vmatmul.mubr.bf16.gmra.mxu0 %v520
        %v663 = vpop.f32.mrf.mxu0
        %v664 = vadd.f32 %v542, %v663
        %v665 = vpop.f32.mrf.mxu0
        %v666 = vadd.f32 %v546, %v665
        %v667 = vpop.f32.mrf.mxu0
        %v668 = vpop.f32.mrf.mxu0
        %669 = vdwg.mxu0
        %v670 = vmul.f32 %v664, 0.5
        %v671 = vmul.f32 %v666, 0.5
        %v672 = vmul.f32 %v664, 0.70710677
        %v673 = vmul.f32 %v666, 0.70710677
        %v674 = vand.u32 2147483647, %v672
        %v675 = vand.u32 2147483647, %v673
        %v676 = vmul.f32 %v674, 0.3275911
        %v677 = vmul.f32 %v675, 0.3275911
        %v678 = vadd.f32 %v676, 1.0
        %v679 = vadd.f32 %v677, 1.0
        %v680 = vrcp.pop %v678
        %v681 = vmul.f32 1.0, %v680
        %v682 = vrcp.pop %v679
        %v683 = vmul.f32 1.0, %v682
        %v684 = vmul.f32 %v681, 1.0614054
        %v685 = vmul.f32 %v683, 1.0614054
        %v686 = vadd.f32 %v684, -1.4531521
        %v687 = vadd.f32 %v685, -1.4531521
        %v688 = vmul.f32 %v681, %v686
        %v689 = vmul.f32 %v683, %v687
        %v690 = vadd.f32 %v688, 1.4214138
        %v691 = vadd.f32 %v689, 1.4214138
        %v692 = vmul.f32 %v681, %v690
        %v693 = vmul.f32 %v683, %v691
        %v694 = vadd.f32 %v692, -0.28449672
        %v695 = vadd.f32 %v693, -0.28449672
        %v696 = vmul.f32 %v681, %v694
        %v697 = vmul.f32 %v683, %v695
        %v698 = vadd.f32 %v696, 0.2548296
        %v699 = vadd.f32 %v697, 0.2548296
        %v700 = vmul.f32 %v681, %v698
        %v701 = vmul.f32 %v683, %v699
        %v702 = vsub.f32 0.0, %v674
        %v703 = vsub.f32 0.0, %v675
        %v704 = vmul.f32 %v702, %v674
        %v705 = vmul.f32 %v703, %v675
        %v706 = vmul.f32 %v704, 1.442695
        %v707 = vpow.pop %v706
        %v708 = vmul.f32 %v705, 1.442695
        %v709 = vpow.pop %v708
        %v710 = vmul.f32 %v700, %v707
        %v711 = vmul.f32 %v701, %v709
        %v712 = vsub.f32 1.0, %v710
        %v713 = vsub.f32 1.0, %v711
        %vm714 = vcmp.lt.f32.partialorder %v672, 0.0
        %vm715 = vcmp.lt.f32.partialorder %v673, 0.0
        %v716 = vsub.f32 0.0, %v712
        %v717 = vsub.f32 0.0, %v713
        %v718 = vsel %vm714, %v716, %v712
        %v719 = vsel %vm715, %v717, %v713
        %v720 = vadd.f32 %v718, 1.0
        %v721 = vadd.f32 %v719, 1.0
        %v722 = vmul.f32 %v670, %v720
        %v723 = vmul.f32 %v671, %v721
        %v724 = vpack.c.bf16 %v722, %v722
        %v725 = vpack.c.bf16 %v723, %v723
        %v726 = vld [vmem:[#allocation7] sm:$0xf]
        %v727 = vld [vmem:[#allocation7 + $0x4] sm:$0xf]
        %v728 = vld [vmem:[#allocation7 + $0x8] sm:$0xf]
        %v729 = vld [vmem:[#allocation7 + $0xc] sm:$0xf]
        %v730 = vld [vmem:[#allocation7 + $0x10] sm:$0xf]
        %v731 = vld [vmem:[#allocation7 + $0x14] sm:$0xf]
        %v732 = vld [vmem:[#allocation7 + $0x18] sm:$0xf]
        %v733 = vld [vmem:[#allocation7 + $0x1c] sm:$0xf]
        %v734 = vld [vmem:[#allocation7 + $0x20] sm:$0xf]
        %v735 = vld [vmem:[#allocation7 + $0x24] sm:$0xf]
        %v736 = vld [vmem:[#allocation7 + $0x28] sm:$0xf]
        %v737 = vld [vmem:[#allocation7 + $0x2c] sm:$0xf]
        %v738 = vld [vmem:[#allocation7 + $0x30] sm:$0xf]
        %v739 = vld [vmem:[#allocation7 + $0x34] sm:$0xf]
        %v740 = vld [vmem:[#allocation7 + $0x38] sm:$0xf]
        %v741 = vld [vmem:[#allocation7 + $0x3c] sm:$0xf]
        %v742 = vld [vmem:[#allocation7 + $0x40] sm:$0xf]
        %v743 = vld [vmem:[#allocation7 + $0x44] sm:$0xf]
        %v744 = vld [vmem:[#allocation7 + $0x48] sm:$0xf]
        %v745 = vld [vmem:[#allocation7 + $0x4c] sm:$0xf]
        %v746 = vld [vmem:[#allocation7 + $0x50] sm:$0xf]
        %v747 = vld [vmem:[#allocation7 + $0x54] sm:$0xf]
        %v748 = vld [vmem:[#allocation7 + $0x58] sm:$0xf]
        %v749 = vld [vmem:[#allocation7 + $0x5c] sm:$0xf]
        %v750 = vld [vmem:[#allocation7 + $0x60] sm:$0xf]
        %v751 = vld [vmem:[#allocation7 + $0x64] sm:$0xf]
        %v752 = vld [vmem:[#allocation7 + $0x68] sm:$0xf]
        %v753 = vld [vmem:[#allocation7 + $0x6c] sm:$0xf]
        %v754 = vld [vmem:[#allocation7 + $0x70] sm:$0xf]
        %v755 = vld [vmem:[#allocation7 + $0x74] sm:$0xf]
        %v756 = vld [vmem:[#allocation7 + $0x78] sm:$0xf]
        %v757 = vld [vmem:[#allocation7 + $0x7c] sm:$0xf]
        %v758 = vld [vmem:[%s5] sm:$0x1]
        %v760 = vlaneseq
        %v761 = vshrl.u32 %v760, 7
        %v762 = vsub.s32 0, %v761
        %v763 = vrot.slane %v758, %v762
        %v797 = vunpack.c.l.b16 %v726
        %v798 = vunpack.c.l.b16 %v727
        %v799 = vunpack.c.l.b16 %v728
        %v800 = vunpack.c.l.b16 %v729
        %v801 = vunpack.c.l.b16 %v730
        %v802 = vunpack.c.l.b16 %v731
        %v803 = vunpack.c.l.b16 %v732
        %v804 = vunpack.c.l.b16 %v733
        %v805 = vunpack.c.l.b16 %v734
        %v806 = vunpack.c.l.b16 %v735
        %v807 = vunpack.c.l.b16 %v736
        %v808 = vunpack.c.l.b16 %v737
        %v809 = vunpack.c.l.b16 %v738
        %v810 = vunpack.c.l.b16 %v739
        %v811 = vunpack.c.l.b16 %v740
        %v812 = vunpack.c.l.b16 %v741
        %v813 = vunpack.c.l.b16 %v742
        %v814 = vunpack.c.l.b16 %v743
        %v815 = vunpack.c.l.b16 %v744
        %v816 = vunpack.c.l.b16 %v745
        %v817 = vunpack.c.l.b16 %v746
        %v818 = vunpack.c.l.b16 %v747
        %v819 = vunpack.c.l.b16 %v748
        %v820 = vunpack.c.l.b16 %v749
        %v821 = vunpack.c.l.b16 %v750
        %v822 = vunpack.c.l.b16 %v751
        %v823 = vunpack.c.l.b16 %v752
        %v824 = vunpack.c.l.b16 %v753
        %v825 = vunpack.c.l.b16 %v754
        %v826 = vunpack.c.l.b16 %v755
        %v827 = vunpack.c.l.b16 %v756
        %v828 = vunpack.c.l.b16 %v757
        %v829 = vpack.c.b16 %v798, %v797
        %v830 = vpack.c.b16 %v800, %v799
        %v831 = vpack.c.b16 %v802, %v801
        %v832 = vpack.c.b16 %v804, %v803
        %v833 = vpack.c.b16 %v806, %v805
        %v834 = vpack.c.b16 %v808, %v807
        %v835 = vpack.c.b16 %v810, %v809
        %v836 = vpack.c.b16 %v812, %v811
        %v837 = vpack.c.b16 %v814, %v813
        %v838 = vpack.c.b16 %v816, %v815
        %v839 = vpack.c.b16 %v818, %v817
        %v840 = vpack.c.b16 %v820, %v819
        %v841 = vpack.c.b16 %v822, %v821
        %v842 = vpack.c.b16 %v824, %v823
        %v843 = vpack.c.b16 %v826, %v825
        %v844 = vpack.c.b16 %v828, %v827
        %861 = vmatprep.subr.bf16.mxu0 0
        %862 = vmatpush1.bf16.msra.mxu0 %v836
        %863 = vmatprep.subr.bf16.mxu0 0
        %864 = vmatpush1.bf16.msra.mxu0 %v835
        %865 = vmatprep.subr.bf16.mxu0 0
        %866 = vmatpush1.bf16.msra.mxu0 %v834
        %867 = vmatprep.subr.bf16.mxu0 0
        %868 = vmatpush1.bf16.msra.mxu0 %v833
        %869 = vmatprep.subr.bf16.mxu0 0
        %870 = vmatpush1.bf16.msra.mxu0 %v832
        %871 = vmatprep.subr.bf16.mxu0 0
        %872 = vmatpush1.bf16.msra.mxu0 %v831
        %873 = vmatprep.subr.bf16.mxu0 0
        %874 = vmatpush1.bf16.msra.mxu0 %v830
        %875 = vmatprep.subr.bf16.mxu0 0
        %876 = vmatpush1.bf16.msra.mxu0 %v829
        %877 = vmatprep.subr.bf16.mxu0 0
        %878 = vmatpush2.bf16.msra.mxu0 %v844
        %879 = vmatprep.subr.bf16.mxu0 0
        %880 = vmatpush2.bf16.msra.mxu0 %v843
        %881 = vmatprep.subr.bf16.mxu0 0
        %882 = vmatpush2.bf16.msra.mxu0 %v842
        %883 = vmatprep.subr.bf16.mxu0 0
        %884 = vmatpush2.bf16.msra.mxu0 %v841
        %885 = vmatprep.subr.bf16.mxu0 0
        %886 = vmatpush2.bf16.msra.mxu0 %v840
        %887 = vmatprep.subr.bf16.mxu0 0
        %888 = vmatpush2.bf16.msra.mxu0 %v839
        %889 = vmatprep.subr.bf16.mxu0 0
        %890 = vmatpush2.bf16.msra.mxu0 %v838
        %891 = vmatprep.subr.bf16.mxu0 0
        %892 = vmatpush2.bf16.msra.mxu0 %v837
        %893 = vmatprep.mubr.bf16.mxu0 %v725
        %894 = vmatmul.mubr.bf16.gmra.mxu0 %v724
        %v895 = vpop.f32.mrf.mxu0
        %v896 = vadd.f32 %v763, %v895
        %v897 = vpop.f32.mrf.mxu0
        %v898 = vpop.f32.mrf.mxu0
        %v899 = vpop.f32.mrf.mxu0
        %900 = vdwg.mxu0
        %v901 = vld [vmem:[%s517] sm:$0x1]
        %v902 = vsub.f32 0.0, %v901
        %v903 = vmul.f32 %v902, 1.442695
        %v904 = vpow.pop %v903
        %v905 = vadd.f32 %v904, 1.0
        %v906 = vrcp.pop %v905
        %v907 = vmul.f32 1.0, %v906
        %v908 = vmul.f32 %v901, %v907
        %v909 = vld [vmem:[#allocation8] sm:$0xff]
        %v910 = vld [vmem:[#allocation8 + $0x8] sm:$0xff]
        %v911 = vld [vmem:[#allocation8 + $0x10] sm:$0xff]
        %v912 = vld [vmem:[#allocation8 + $0x18] sm:$0xff]
        %v913 = vld [vmem:[#allocation8 + $0x20] sm:$0xff]
        %v914 = vld [vmem:[#allocation8 + $0x28] sm:$0xff]
        %v915 = vld [vmem:[#allocation8 + $0x30] sm:$0xff]
        %v916 = vld [vmem:[#allocation8 + $0x38] sm:$0xff]
        %v917 = vld [vmem:[%s7] sm:$0x3]
        %v919 = vlaneseq
        %v920 = vshrl.u32 %v919, 7
        %v921 = vsub.s32 0, %v920
        %v922 = vrot.slane %v917, %v921
        %v923 = vlaneseq
        %v924 = vshrl.u32 %v923, 7
        %v925 = vsub.s32 1, %v924
        %v926 = vrot.slane %v917, %v925
        %vm929 = vcmask 261120
        %v931 = vsel %vm929, %v908, 0
        %933 = vmatprep.subr.mxu0 0.0
        %934 = vmatpush1.msra.mxu0 0.0
        %935 = vmatprep.subr.mxu0 0.0
        %936 = vmatpush1.msra.mxu0 0.0
        %937 = vmatprep.subr.mxu0 0.0
        %938 = vmatpush1.msra.mxu0 0.0
        %939 = vmatprep.subr.mxu0 0.0
        %940 = vmatpush1.msra.mxu0 0.0
        %941 = vmatprep.subr.mxu0 0.0
        %942 = vmatpush1.msra.mxu0 0.0
        %943 = vmatprep.subr.mxu0 0.0
        %944 = vmatpush1.msra.mxu0 0.0
        %945 = vmatprep.subr.mxu0 0.0
        %946 = vmatpush1.msra.mxu0 0.0
        %947 = vmatprep.subr.mxu0 0.0
        %948 = vmatpush1.msra.mxu0 0.0
        %949 = vmatprep.subr.mxu0 0.0
        %950 = vmatpush1.msra.mxu0 0.0
        %951 = vmatprep.subr.mxu0 0.0
        %952 = vmatpush1.msra.mxu0 0.0
        %953 = vmatprep.subr.mxu0 0.0
        %954 = vmatpush1.msra.mxu0 0.0
        %955 = vmatprep.subr.mxu0 0.0
        %956 = vmatpush1.msra.mxu0 0.0
        %957 = vmatprep.subr.mxu0 %v916
        %958 = vmatpush1.msra.mxu0 %v915
        %959 = vmatprep.subr.mxu0 %v914
        %960 = vmatpush1.msra.mxu0 %v913
        %961 = vmatprep.subr.mxu0 %v912
        %962 = vmatpush1.msra.mxu0 %v911
        %963 = vmatprep.subr.mxu0 %v910
        %964 = vmatpush1.msra.mxu0 %v909
        %965 = vmatprep.subr.mxu0 0.0
        %966 = vmatpush2.msra.mxu0 0.0
        %967 = vmatprep.subr.mxu0 0.0
        %968 = vmatpush2.msra.mxu0 0.0
        %969 = vmatprep.subr.mxu0 0.0
        %970 = vmatpush2.msra.mxu0 0.0
        %971 = vmatprep.subr.mxu0 0.0
        %972 = vmatpush2.msra.mxu0 0.0
        %973 = vmatprep.subr.mxu0 0.0
        %974 = vmatpush2.msra.mxu0 0.0
        %975 = vmatprep.subr.mxu0 0.0
        %976 = vmatpush2.msra.mxu0 0.0
        %977 = vmatprep.subr.mxu0 0.0
        %978 = vmatpush2.msra.mxu0 0.0
        %979 = vmatprep.subr.mxu0 0.0
        %980 = vmatpush2.msra.mxu0 0.0
        %981 = vmatprep.subr.mxu0 0.0
        %982 = vmatpush2.msra.mxu0 0.0
        %983 = vmatprep.subr.mxu0 0.0
        %984 = vmatpush2.msra.mxu0 0.0
        %985 = vmatprep.subr.mxu0 0.0
        %986 = vmatpush2.msra.mxu0 0.0
        %987 = vmatprep.subr.mxu0 0.0
        %988 = vmatpush2.msra.mxu0 0.0
        %989 = vmatprep.subr.mxu0 0.0
        %990 = vmatpush2.msra.mxu0 0.0
        %991 = vmatprep.subr.mxu0 0.0
        %992 = vmatpush2.msra.mxu0 0.0
        %993 = vmatprep.subr.mxu0 0.0
        %994 = vmatpush2.msra.mxu0 0.0
        %995 = vmatprep.subr.mxu0 0.0
        %996 = vmatpush2.msra.mxu0 0.0
        %997 = vmatprep.mubr.f32.mxu0 0.0
        %998 = vmatmul.mubr.f32.gmra.mxu0 %v931
        %v999 = vpop.f32.mrf.mxu0
        %v1000 = vadd.f32 %v922, %v999
        %v1001 = vpop.f32.mrf.mxu0
        %v1002 = vadd.f32 %v926, %v1001
        %1003 = vdwg.mxu0
        %1004 = vadd.xlane.f32.xlu0 %v896
        %v1005 = vpop.xlane.xlu0 %1004
        %v1006 = vrcp.pop 128.0
        %v1007 = vmul.f32 %v1005, %v1006
        %v1008 = vsub.f32 %v896, %v1007
        %v1009 = vmul.f32 %v1008, %v1008
        %1010 = vadd.xlane.f32.xlu0 %v1009
        %v1011 = vpop.xlane.xlu0 %1010
        %v1012 = vmul.f32 %v1011, %v1006
        %v1013 = vadd.f32 %v1012, 1e-05
        %v1014 = vrsqrt.pop %v1013
        %v1015 = vmul.f32 %v1008, %v1014
        %v1016 = vld [vmem:[%s8] sm:$0x1]
        %v1018 = vlaneseq
        %v1019 = vshrl.u32 %v1018, 7
        %v1020 = vsub.s32 0, %v1019
        %v1021 = vrot.slane %v1016, %v1020
        %v1023 = vmul.f32 %v1015, %v1021
        %v1024 = vld [vmem:[%s9] sm:$0x1]
        %v1026 = vlaneseq
        %v1027 = vshrl.u32 %v1026, 7
        %v1028 = vsub.s32 0, %v1027
        %v1029 = vrot.slane %v1024, %v1028
        %v1031 = vadd.f32 %v1023, %v1029
        %v1032 = vadd.f32 %v1000, 1.0
        %v1033 = vlaneseq
        %v1034 = vshrl.u32 %v1033, 7
        %v1035 = vsub.s32 0, %v1034
        %v1036 = vrot.slane %v1032, %v1035
        %v1037 = vmul.f32 %v1031, %v1036
        %v1038 = vlaneseq
        %v1039 = vshrl.u32 %v1038, 7
        %v1040 = vsub.s32 0, %v1039
        %v1041 = vrot.slane %v1002, %v1040
        %v1042 = vadd.f32 %v1037, %v1041
        %v1043 = vsub.f32 0.0, %v1042
        %v1044 = vmul.f32 %v1043, 1.442695
        %v1045 = vpow.pop %v1044
        %v1046 = vadd.f32 %v1045, 1.0
        %v1047 = vrcp.pop %v1046
        %v1048 = vmul.f32 1.0, %v1047
        %v1049 = vmul.f32 %v1042, %v1048
        %v1050 = vpack.c.bf16 %v1049, %v1049
        %v1051 = vld [vmem:[#allocation10] sm:$0xf]
        %v1052 = vld [vmem:[#allocation10 + $0x4] sm:$0xf]
        %v1053 = vld [vmem:[#allocation10 + $0x8] sm:$0xf]
        %v1054 = vld [vmem:[#allocation10 + $0xc] sm:$0xf]
        %v1055 = vld [vmem:[#allocation10 + $0x10] sm:$0xf]
        %v1056 = vld [vmem:[#allocation10 + $0x14] sm:$0xf]
        %v1057 = vld [vmem:[#allocation10 + $0x18] sm:$0xf]
        %v1058 = vld [vmem:[#allocation10 + $0x1c] sm:$0xf]
        %v1059 = vld [vmem:[#allocation10 + $0x20] sm:$0xf]
        %v1060 = vld [vmem:[#allocation10 + $0x24] sm:$0xf]
        %v1061 = vld [vmem:[#allocation10 + $0x28] sm:$0xf]
        %v1062 = vld [vmem:[#allocation10 + $0x2c] sm:$0xf]
        %v1063 = vld [vmem:[#allocation10 + $0x30] sm:$0xf]
        %v1064 = vld [vmem:[#allocation10 + $0x34] sm:$0xf]
        %v1065 = vld [vmem:[#allocation10 + $0x38] sm:$0xf]
        %v1066 = vld [vmem:[#allocation10 + $0x3c] sm:$0xf]
        %v1067 = vld [vmem:[%s11] sm:$0x1]
        %v1069 = vlaneseq
        %v1070 = vshrl.u32 %v1069, 7
        %v1071 = vsub.s32 0, %v1070
        %v1072 = vrot.slane %v1067, %v1071
        %v1090 = vunpack.c.l.b16 %v1051
        %v1091 = vunpack.c.l.b16 %v1052
        %v1092 = vunpack.c.l.b16 %v1053
        %v1093 = vunpack.c.l.b16 %v1054
        %v1094 = vunpack.c.l.b16 %v1055
        %v1095 = vunpack.c.l.b16 %v1056
        %v1096 = vunpack.c.l.b16 %v1057
        %v1097 = vunpack.c.l.b16 %v1058
        %v1098 = vunpack.c.l.b16 %v1059
        %v1099 = vunpack.c.l.b16 %v1060
        %v1100 = vunpack.c.l.b16 %v1061
        %v1101 = vunpack.c.l.b16 %v1062
        %v1102 = vunpack.c.l.b16 %v1063
        %v1103 = vunpack.c.l.b16 %v1064
        %v1104 = vunpack.c.l.b16 %v1065
        %v1105 = vunpack.c.l.b16 %v1066
        %v1106 = vpack.c.b16 %v1091, %v1090
        %v1107 = vpack.c.b16 %v1093, %v1092
        %v1108 = vpack.c.b16 %v1095, %v1094
        %v1109 = vpack.c.b16 %v1097, %v1096
        %v1110 = vpack.c.b16 %v1099, %v1098
        %v1111 = vpack.c.b16 %v1101, %v1100
        %v1112 = vpack.c.b16 %v1103, %v1102
        %v1113 = vpack.c.b16 %v1105, %v1104
        %1122 = vmatprep.subr.bf16.mxu0 0
        %1123 = vmatpush1.bf16.msra.mxu0 %v1113
        %1124 = vmatprep.subr.bf16.mxu0 0
        %1125 = vmatpush1.bf16.msra.mxu0 %v1112
        %1126 = vmatprep.subr.bf16.mxu0 0
        %1127 = vmatpush1.bf16.msra.mxu0 %v1111
        %1128 = vmatprep.subr.bf16.mxu0 0
        %1129 = vmatpush1.bf16.msra.mxu0 %v1110
        %1130 = vmatprep.subr.bf16.mxu0 0
        %1131 = vmatpush1.bf16.msra.mxu0 %v1109
        %1132 = vmatprep.subr.bf16.mxu0 0
        %1133 = vmatpush1.bf16.msra.mxu0 %v1108
        %1134 = vmatprep.subr.bf16.mxu0 0
        %1135 = vmatpush1.bf16.msra.mxu0 %v1107
        %1136 = vmatprep.subr.bf16.mxu0 0
        %1137 = vmatpush1.bf16.msra.mxu0 %v1106
        %1138 = vmatprep.subr.bf16.mxu0 0
        %1139 = vmatpush2.bf16.msra.mxu0 0
        %1140 = vmatprep.subr.bf16.mxu0 0
        %1141 = vmatpush2.bf16.msra.mxu0 0
        %1142 = vmatprep.subr.bf16.mxu0 0
        %1143 = vmatpush2.bf16.msra.mxu0 0
        %1144 = vmatprep.subr.bf16.mxu0 0
        %1145 = vmatpush2.bf16.msra.mxu0 0
        %1146 = vmatprep.subr.bf16.mxu0 0
        %1147 = vmatpush2.bf16.msra.mxu0 0
        %1148 = vmatprep.subr.bf16.mxu0 0
        %1149 = vmatpush2.bf16.msra.mxu0 0
        %1150 = vmatprep.subr.bf16.mxu0 0
        %1151 = vmatpush2.bf16.msra.mxu0 0
        %1152 = vmatprep.subr.bf16.mxu0 0
        %1153 = vmatpush2.bf16.msra.mxu0 0
        %1154 = vmatprep.mubr.bf16.mxu0 0
        %1155 = vmatmul.mubr.bf16.gmra.mxu0 %v1050
        %v1156 = vpop.f32.mrf.mxu0
        %v1157 = vadd.f32 %v1072, %v1156
        %v1158 = vpop.f32.mrf.mxu0
        %v1159 = vpop.f32.mrf.mxu0
        %v1160 = vpop.f32.mrf.mxu0
        %1161 = vdwg.mxu0
        %v1162 = vadd.f32 %v519, %v1157
        %1163 = vst [vmem:[%s514] sm:$0xff] %v1162
        %s1164 = sand.u32 %s317, 1
        %s1165 = scalar_lea.sflag [#allocation4], %s1164
        %s1166 = sand.u32 %s317, 1
        %s1167 = smul.addr %s1166, 8
        %s1168 = scalar_lea.vmem [#allocation11], %s1167
        // Predicated region
        $region89: #{sffn_forward.1} parent=67 // pred_check
          %p1169 = pneg %p327
        $region90: #{sffn_forward.1} parent=67 // pred_check_branch
          %1171 = sbr.rel (%p1169) target = $region92
        $region91: #{sffn_forward.1} parent=67 // pred_region
          %s1173 = ssub.s32 128, 128
          %1174 = vsyncadd %s1165, %s1173
          %s1175 = sadd.s32 %s36, %s35
          %s1176 = smul.addr %s1175, 128
          %s1177 = scalar_lea.hbm %s12, %s1176
          %s1179 = sshll.u32 %s1168, 4
          %s1180 = int_to_ptr.vmem [resolvable:$true] %s1179
          %1182 = dma.vmem_to_hbm [thread:$0]  %s1180, 128, %s1177, %s1165
        $region92: #{sffn_forward.1} parent=67 // pred_fallthru
          _
      $region68: #{sffn_forward.1} parent=5 // pred_fallthru
        _
      %p1183 = scmp.le.s32.totalorder 2, %s26
      // Predicated region
      $region93: #{sffn_forward.1} parent=5 // pred_check
        %p1184 = pneg %p1183
      $region94: #{sffn_forward.1} parent=5 // pred_check_branch
        %1186 = sbr.rel (%p1184) target = $region96
      $region95: #{sffn_forward.1} parent=5 // pred_region
        %s1187 = ssub.s32 %s26, 2
        // Predicated region
        $region97: #{sffn_forward.1} parent=95 // pred_check
          %p1188 = pneg %p333
        $region98: #{sffn_forward.1} parent=95 // pred_check_branch
          %1190 = sbr.rel (%p1188) target = $region100
        $region99: #{sffn_forward.1} parent=95 // pred_region
          %s1191 = sand.u32 %s318, 1
          %s1192 = scalar_lea.sflag [#allocation4], %s1191
          %s1193 = sand.u32 %s318, 1
          %s1194 = smul.addr %s1193, 8
          %s1195 = scalar_lea.vmem [#allocation11], %s1194
          %1196 = dma.done %s1192, 128
        $region100: #{sffn_forward.1} parent=95 // pred_fallthru
          _
      $region96: #{sffn_forward.1} parent=5 // pred_fallthru
        _
    $region6: #{sffn_forward.1} parent=1 // loop_footer
      %s30 = sadd.s32 1, %s26
    $region7: #{sffn_forward.1} parent=1 // loop_footer_branch
      %25 = sbr.rel target = $region3
    $region8: #{sffn_forward.1} parent=1 // loop_exit
      _
    %1197 = vsyncpa [#allocation3], 1
    %s1198 = scalar_lea.sflag [#allocation3], 1
    %1199 = vsyncpa %s1198, 1
    %1200 = vsyncpa [#allocation6], 1
    %1201 = vsyncpa [#allocation9], 1
    %1202 = vsyncpa [#allocation4], 1
    %s1203 = scalar_lea.sflag [#allocation4], 1
    %1204 = vsyncpa %s1203, 1

</llo_original>
